<compile_context>
chip_gen: v6e
topology: v6e:2x2x1
jax: 0.10.0
libtpu: 0.0.40
codegen_flags: <defaults>
</compile_context>

<pallas_src>
import functools

import jax
import jax.numpy as jnp
from jax.experimental import pallas as pl
from jax.experimental.pallas import tpu as pltpu

HIDDEN = 768          # BERT hidden size (fusion_linear: 3*768 -> 768)


def _round_up(x, m):
    return (x + m - 1) // m * m


# ----------------------------------------------------------------------------
# Kernel A: surrogate "BERT" dense layer + tanh + seq-sum (single HBM pass).
#   per (batch b, seq tile s):
#     h              = tanh(x_bf16 @ W_bf16 + b)        (MXU, f32 accumulate)
#     hidden[b,tile] = h  (stored bf16)
#     h_sum[b]      += sum over real rows of h          (for mean(dim=1))
# ----------------------------------------------------------------------------
def _encoder_dense_kernel(x_ref, w_ref, b_ref, hid_ref, sum_ref, *,
                          seq_len, ts):
    s = pl.program_id(1)

    @pl.when(s == 0)
    def _():
        sum_ref[...] = jnp.zeros_like(sum_ref)

    acc = jnp.dot(x_ref[0], w_ref[...],
                  preferred_element_type=jnp.float32)            # bf16 MXU
    h = jnp.tanh(acc + b_ref[...])                               # f32 EUP
    hid_ref[0] = h.astype(hid_ref.dtype)                         # bf16 store

    # Only real (non tiling-pad) rows count in the mean; mask from iota
    # (pure VPU work, no extra DMA stream).
    row = jax.lax.broadcasted_iota(jnp.int32, (ts, 1), 0) + s * ts
    valid = (row < seq_len).astype(jnp.float32)                  # (ts, 1)
    sum_ref[0] += jnp.sum(h * valid, axis=0, keepdims=True)


def encoder_dense_tanh(x_bf16, w_bf16, bias, ts, seq_len):
    B, s_pad, H = x_bf16.shape
    n_s = s_pad // ts
    kernel = functools.partial(_encoder_dense_kernel, seq_len=seq_len, ts=ts)
    return pl.pallas_call(
        kernel,
        out_shape=(
            jax.ShapeDtypeStruct((B, s_pad, H), jnp.bfloat16),   # hidden (bf16)
            jax.ShapeDtypeStruct((B, 1, H), jnp.float32),        # seq-sum
        ),
        grid=(B, n_s),
        in_specs=[
            pl.BlockSpec((1, ts, H), lambda b, s: (b, s, 0)),    # x (bf16)
            pl.BlockSpec((H, H), lambda b, s: (0, 0)),           # W (bf16, resident)
            pl.BlockSpec((1, H), lambda b, s: (0, 0)),           # bias
        ],
        out_specs=(
            pl.BlockSpec((1, ts, H), lambda b, s: (b, s, 0)),
            pl.BlockSpec((1, 1, H), lambda b, s: (b, 0, 0)),     # accumulator
        ),
        compiler_params=pltpu.CompilerParams(
            dimension_semantics=("parallel", "arbitrary")),
    )(x_bf16, w_bf16, bias)


# ----------------------------------------------------------------------------
# Kernel C (B fused in): gate matmul + sigmoid computed once per batch element
# into a persistent VMEM scratch, then gated broadcast multiply over seq tiles.
#   gate   = sigmoid([h_mean|t_mean|r_mean] @ W_fusion + b_fusion)   (s == 0)
#   out    = hidden * gate
# ----------------------------------------------------------------------------
def _gated_output_kernel(h_ref, fin_ref, fw_ref, fb_ref, o_ref, gate_ref):
    @pl.when(pl.program_id(1) == 0)
    def _():
        acc = jnp.dot(fin_ref[0].astype(jnp.bfloat16), fw_ref[...],
                      preferred_element_type=jnp.float32)        # (1, H)
        gate_ref[...] = jax.nn.sigmoid(acc + fb_ref[...])

    o_ref[0] = (h_ref[0].astype(jnp.float32) * gate_ref[...]).astype(o_ref.dtype)


def gated_output(hidden_bf16, fusion_input_b13h, fw_bf16, fb, ts):
    B, s_pad, H = hidden_bf16.shape
    K = fw_bf16.shape[0]
    n_s = s_pad // ts
    return pl.pallas_call(
        _gated_output_kernel,
        out_shape=jax.ShapeDtypeStruct((B, s_pad, H), jnp.float32),
        grid=(B, n_s),
        in_specs=[
            pl.BlockSpec((1, ts, H), lambda b, s: (b, s, 0)),    # hidden (bf16)
            pl.BlockSpec((1, 1, K), lambda b, s: (b, 0, 0)),     # fusion_input
            pl.BlockSpec((K, H), lambda b, s: (0, 0)),           # W_fusion (bf16, resident)
            pl.BlockSpec((1, H), lambda b, s: (0, 0)),           # b_fusion
        ],
        out_specs=pl.BlockSpec((1, ts, H), lambda b, s: (b, s, 0)),
        scratch_shapes=[pltpu.VMEM((1, H), jnp.float32)],        # gate, persists over s
        compiler_params=pltpu.CompilerParams(
            dimension_semantics=("parallel", "arbitrary")),
    )(hidden_bf16, fusion_input_b13h, fw_bf16, fb)


# ----------------------------------------------------------------------------
# Parameter init (deterministic) + full forward
# ----------------------------------------------------------------------------
def init_params(key, vocab_size=32, max_pos=64, hidden=HIDDEN):
    ks = jax.random.split(key, 8)
    scale = 0.02
    return {
        # surrogate BERT
        "tok_emb": scale * jax.random.normal(ks[0], (vocab_size, hidden), jnp.float32),
        "pos_emb": scale * jax.random.normal(ks[1], (max_pos, hidden), jnp.float32),
        "bert_w": (scale * jax.random.normal(ks[2], (hidden, hidden),
                                             jnp.float32)).astype(jnp.bfloat16),
        "bert_b": jnp.zeros((1, hidden), jnp.float32),
        # nn.Embedding(2, 768) / nn.Embedding(10, 768)
        "tone_emb": scale * jax.random.normal(ks[3], (2, hidden), jnp.float32),
        "rhyme_emb": scale * jax.random.normal(ks[4], (10, hidden), jnp.float32),
        # nn.Linear(2304, 768): stored as [in, out], bf16 for the MXU
        "fusion_w": (scale * jax.random.normal(ks[5], (3 * hidden, hidden),
                                               jnp.float32)).astype(jnp.bfloat16),
        "fusion_b": scale * jax.random.normal(ks[6], (1, hidden), jnp.float32),
    }


def bidirectional_encoder_forward(params, input_ids, attention_mask,
                                  structural_tone, structural_rhyme):
    B, S = input_ids.shape
    H = params["tok_emb"].shape[1]
    max_pos = params["pos_emb"].shape[0]
    assert S <= max_pos, f"sequence length {S} exceeds positional table {max_pos}"

    # seq tile: multiple of 8 (sublane); 512 when S allows to amortize the
    # ~0.35us per-grid-step overhead (HBM-bound kernel).
    if S >= 512:
        ts = 512
    elif S >= 256:
        ts = 256
    else:
        ts = _round_up(S, 8)
    s_pad = _round_up(S, ts)

    # --- fused prologue in the wrapper: gather + (tok+pos)*mask -> bf16 ---
    # XLA fuses this with the jnp.take that already materializes [B,S,H];
    # the Pallas kernel then reads a single bf16 stream (no pos/mask re-DMA).
    tok = jnp.take(params["tok_emb"], input_ids, axis=0)            # [B, S, H]
    pos = params["pos_emb"][:S][None, :, :]                         # [1, S, H]
    mask = attention_mask.astype(jnp.float32)[..., None]            # [B, S, 1]
    x = ((tok + pos) * mask).astype(jnp.bfloat16)                   # [B, S, H] bf16
    if s_pad != S:
        x = jnp.pad(x, ((0, 0), (0, s_pad - S), (0, 0)))

    # --- Kernel A: dense + tanh + seq-sum in one HBM pass ---
    hidden_bf16, h_sum = encoder_dense_tanh(
        x, params["bert_w"], params["bert_b"], ts, S)
    h_mean = h_sum[:, 0, :] / jnp.float32(S)                        # [B, H]

    # --- structural embeddings + tiny seq-means (JAX glue) ---
    tone_emb = jnp.take(params["tone_emb"], structural_tone, axis=0)     # [B, St, H]
    rhyme_emb = jnp.take(params["rhyme_emb"], structural_rhyme, axis=0)  # [B, Sr, H]
    t_mean = jnp.mean(tone_emb, axis=1)                             # [B, H]
    r_mean = jnp.mean(rhyme_emb, axis=1)                            # [B, H]

    # --- Kernel C: fused gate (matmul + sigmoid, once per batch) + multiply ---
    fusion_input = jnp.concatenate(
        [h_mean, t_mean, r_mean], axis=-1)[:, None, :]              # [B, 1, 3H]
    out_pad = gated_output(hidden_bf16, fusion_input,
                           params["fusion_w"], params["fusion_b"], ts)
    return out_pad[:, :S, :]


if __name__ == "__main__":
    key = jax.random.PRNGKey(0)
    pkey, k1, k2, k3 = jax.random.split(key, 4)

    B, S = 2, 8
    params = init_params(pkey)

    input_ids = jax.random.randint(k1, (B, S), 0, 32, dtype=jnp.int32)
    attention_mask = jnp.ones((B, S), dtype=jnp.int32)
    structural_tone = jax.random.randint(k2, (B, S), 0, 2, dtype=jnp.int32)
    structural_rhyme = jax.random.randint(k3, (B, S), 0, 10, dtype=jnp.int32)

    out = bidirectional_encoder_forward(params, input_ids, attention_mask,
                                        structural_tone, structural_rhyme)
    jax.block_until_ready(out)
    assert out.shape == (B, S, HIDDEN), out.shape
    assert bool(jnp.all(jnp.isfinite(out)))
    print("KERNEL_OK")
</pallas_src>

<mosaic_0001>
module attributes {stable_mosaic.version = 11 : i64} {
  func.func @_encoder_dense_kernel(%arg0: i32, %arg1: i32, %arg2: memref<1x8x768xbf16, #tpu.memory_space<vmem>>, %arg3: memref<768x768xbf16, #tpu.memory_space<vmem>>, %arg4: memref<1x768xf32, #tpu.memory_space<vmem>>, %arg5: memref<1x8x768xbf16, #tpu.memory_space<vmem>>, %arg6: memref<1x1x768xf32, #tpu.memory_space<vmem>>) attributes {dimension_semantics = [#tpu.dimension_semantics<parallel>, #tpu.dimension_semantics<arbitrary>], iteration_bounds = array<i64: 2, 1>, scalar_prefetch = 0 : i64, scratch_operands = 0 : i64, tpu.core_type = #tpu.core_type<tc>, window_params = [{transform_indices = @transform_0, window_bounds = array<i64: 1, 8, 768>}, {pipeline_mode = #tpu.pipeline_mode<synchronous>, transform_indices = @transform_1, window_bounds = array<i64: 768, 768>}, {pipeline_mode = #tpu.pipeline_mode<synchronous>, transform_indices = @transform_2, window_bounds = array<i64: 1, 768>}, {transform_indices = @transform_3, window_bounds = array<i64: 1, 8, 768>}, {transform_indices = @transform_4, window_bounds = array<i64: 1, 1, 768>}]} {
    %c0_i32 = arith.constant 0 : i32
    %0 = arith.cmpi eq, %arg1, %c0_i32 : i32
    %1 = arith.extui %0 : i1 to i32
    %c0_i32_0 = arith.constant 0 : i32
    %2 = arith.cmpi ne, %1, %c0_i32_0 : i32
    scf.if %2 {
      %cst_18 = arith.constant 0.000000e+00 : f32
      %33 = vector.broadcast %cst_18 : f32 to vector<1x1x768xf32>
      %c0_19 = arith.constant 0 : index
      %c0_20 = arith.constant 0 : index
      %c0_21 = arith.constant 0 : index
      %34 = vector.load %arg6[%c0_19, %c0_20, %c0_21] : memref<1x1x768xf32, #tpu.memory_space<vmem>>, vector<1x1x768xf32>
      tpu.vector_store %arg6[%c0_19, %c0_20, %c0_21], %33 {strides = array<i32>} : memref<1x1x768xf32, #tpu.memory_space<vmem>>, vector<1x1x768xf32>,
    } else {
    }
    %c0 = arith.constant 0 : index
    %c0_1 = arith.constant 0 : index
    %c0_2 = arith.constant 0 : index
    %3 = vector.load %arg2[%c0, %c0_1, %c0_2] : memref<1x8x768xbf16, #tpu.memory_space<vmem>>, vector<1x8x768xbf16>
    %4 = vector.shape_cast %3 : vector<1x8x768xbf16> to vector<8x768xbf16>
    %c0_3 = arith.constant 0 : index
    %c0_4 = arith.constant 0 : index
    %5 = vector.load %arg3[%c0_3, %c0_4] : memref<768x768xbf16, #tpu.memory_space<vmem>>, vector<768x768xbf16>
    %cst = arith.constant dense<0.000000e+00> : vector<8x768xf32>
    %6 = tpu.matmul %4, %5, %cst {dimension_numbers = #tpu.dot_dimension_numbers<[1], [0], [0], [1], [0, 0, 1, 1], [], []>} : vector<8x768xbf16>, vector<768x768xbf16>, vector<8x768xf32> -> vector<8x768xf32>
    %c0_5 = arith.constant 0 : index
    %c0_6 = arith.constant 0 : index
    %7 = vector.load %arg4[%c0_5, %c0_6] : memref<1x768xf32, #tpu.memory_space<vmem>>, vector<1x768xf32>
    %8 = vector.broadcast %7 : vector<1x768xf32> to vector<8x768xf32>
    %9 = arith.addf %6, %8 : vector<8x768xf32>
    %10 = math.tanh %9 : vector<8x768xf32>
    %11 = arith.truncf %10 : vector<8x768xf32> to vector<8x768xbf16>
    %c0_7 = arith.constant 0 : index
    %c0_8 = arith.constant 0 : index
    %c0_9 = arith.constant 0 : index
    %12 = vector.load %arg5[%c0_7, %c0_8, %c0_9] : memref<1x8x768xbf16, #tpu.memory_space<vmem>>, vector<1x8x768xbf16>
    %13 = vector.shape_cast %12 : vector<1x8x768xbf16> to vector<8x768xbf16>
    %14 = vector.shape_cast %11 : vector<8x768xbf16> to vector<1x8x768xbf16>
    tpu.vector_store %arg5[%c0_7, %c0_8, %c0_9], %14 {strides = array<i32>} : memref<1x8x768xbf16, #tpu.memory_space<vmem>>, vector<1x8x768xbf16>,
    %15 = tpu.iota {dimensions = array<i32: 0>} : vector<8x1xi32>
    %c8_i32 = arith.constant 8 : i32
    %16 = arith.muli %arg1, %c8_i32 : i32
    %17 = vector.broadcast %16 : i32 to vector<8x1xi32>
    %18 = arith.addi %15, %17 : vector<8x1xi32>
    %c8_i32_10 = arith.constant 8 : i32
    %19 = vector.broadcast %c8_i32_10 : i32 to vector<8x1xi32>
    %20 = arith.cmpi slt, %18, %19 : vector<8x1xi32>
    %21 = arith.extui %20 : vector<8x1xi1> to vector<8x1xi32>
    %22 = arith.sitofp %21 : vector<8x1xi32> to vector<8x1xf32>
    %c0_11 = arith.constant 0 : index
    %c0_12 = arith.constant 0 : index
    %c0_13 = arith.constant 0 : index
    %23 = vector.load %arg6[%c0_11, %c0_12, %c0_13] : memref<1x1x768xf32, #tpu.memory_space<vmem>>, vector<1x1x768xf32>
    %24 = vector.shape_cast %23 : vector<1x1x768xf32> to vector<1x768xf32>
    %25 = vector.broadcast %22 : vector<8x1xf32> to vector<8x768xf32>
    %26 = arith.mulf %10, %25 : vector<8x768xf32>
    %cst_14 = arith.constant dense<0.000000e+00> : vector<768xf32>
    %27 = vector.multi_reduction <add>, %26, %cst_14 [0] : vector<8x768xf32> to vector<768xf32>
    %28 = vector.shape_cast %27 : vector<768xf32> to vector<1x768xf32>
    %29 = arith.addf %24, %28 : vector<1x768xf32>
    %c0_15 = arith.constant 0 : index
    %c0_16 = arith.constant 0 : index
    %c0_17 = arith.constant 0 : index
    %30 = vector.load %arg6[%c0_15, %c0_16, %c0_17] : memref<1x1x768xf32, #tpu.memory_space<vmem>>, vector<1x1x768xf32>
    %31 = vector.shape_cast %30 : vector<1x1x768xf32> to vector<1x768xf32>
    %32 = vector.shape_cast %29 : vector<1x768xf32> to vector<1x1x768xf32>
    tpu.vector_store %arg6[%c0_15, %c0_16, %c0_17], %32 {strides = array<i32>} : memref<1x1x768xf32, #tpu.memory_space<vmem>>, vector<1x1x768xf32>,
    return
  }
  func.func @transform_0(%arg0: i32, %arg1: i32) -> (i32, i32, i32) {
    %c0_i32 = arith.constant 0 : i32
    %c0_i32_0 = arith.constant 0 : i32
    return %arg0, %arg1, %c0_i32 : i32, i32, i32
  }
  func.func @transform_1(%arg0: i32, %arg1: i32) -> (i32, i32) {
    %c0_i32 = arith.constant 0 : i32
    %c0_i32_0 = arith.constant 0 : i32
    %c0_i32_1 = arith.constant 0 : i32
    return %c0_i32, %c0_i32_0 : i32, i32
  }
  func.func @transform_2(%arg0: i32, %arg1: i32) -> (i32, i32) {
    %c0_i32 = arith.constant 0 : i32
    %c0_i32_0 = arith.constant 0 : i32
    %c0_i32_1 = arith.constant 0 : i32
    return %c0_i32, %c0_i32_0 : i32, i32
  }
  func.func @transform_3(%arg0: i32, %arg1: i32) -> (i32, i32, i32) {
    %c0_i32 = arith.constant 0 : i32
    %c0_i32_0 = arith.constant 0 : i32
    return %arg0, %arg1, %c0_i32 : i32, i32, i32
  }
  func.func @transform_4(%arg0: i32, %arg1: i32) -> (i32, i32, i32) {
    %c0_i32 = arith.constant 0 : i32
    %c0_i32_0 = arith.constant 0 : i32
    %c0_i32_1 = arith.constant 0 : i32
    return %arg0, %c0_i32, %c0_i32_0 : i32, i32, i32
  }
}

</mosaic_0001>

<llo_original>
// kernel: tpu_custom_call.1
$region0: #{tpu_custom_call.1}
  #allocation0 [shape = 'u32[]', space=smem, size = 0x4, offset = 0x4, fixed_abs, tag = 'smem constant byte address 0x4 - core index']
  #allocation1 [shape = 'u32[144,128]{1,0:T(1,128)}', space=vmem, size = 0x12000, scoped, tag = 'internal scratch']
  %s0 = inlined_call_operand.hbm [shape: bf16[2,8,768], index: 0, kind: input, shape index: {}]
  %s1 = inlined_call_operand.hbm [shape: bf16[768,768], index: 1, kind: input, shape index: {}]
  %s2 = inlined_call_operand.hbm [shape: f32[1,768], index: 2, kind: input, shape index: {}]
  %s3 = inlined_call_operand.hbm [shape: bf16[2,8,768], index: 3, kind: output, shape index: {0}]
  %s4 = inlined_call_operand.hbm [shape: f32[2,1,768], index: 4, kind: output, shape index: {1}]
  %5 = xla_tuple %s3, %s4
  %s6 = sld [smem:[#allocation0]]
  $region69: #{tpu_custom_call.1} parent=0
    _
  %s8 = ssub.s32 1, %s6
  %s9 = scalar_select 0, %s8, %s6
  $region1: #{tpu_custom_call.1} parent=0
    #allocation2 [shape = 'u8[24576]{0}', space=vmem, size = 0x6000, scoped, tag = 'input window, operand 0']
    #allocation3 [shape = 's32[2]{0}', space=sflag, size = 0x8, scoped, tag = 'scoped memory for tpu_custom_call.1']
    #allocation4 [shape = 's32[2]{0}', space=sflag, size = 0x8, scoped, tag = 'scoped memory for tpu_custom_call.1']
    #allocation5 [shape = 'u8[1179648]{0}', space=vmem, size = 0x120000, scoped, tag = 'input window, operand 1, single buffered']
    #allocation6 [shape = 's32[1]{0}', space=sflag, size = 0x4, scoped, tag = 'scoped memory for tpu_custom_call.1']
    #allocation7 [shape = 'u8[3072]{0}', space=vmem, size = 0xc00, scoped, tag = 'input window, operand 2, single buffered']
    #allocation8 [shape = 'u8[24576]{0}', space=vmem, size = 0x6000, scoped, tag = 'output window, operand 0']
    #allocation9 [shape = 'u8[6144]{0}', space=vmem, size = 0x1800, scoped, tag = 'output window, operand 1']
    #allocation10 [shape = 's32[2]{0}', space=sflag, size = 0x8, scoped, tag = 'scoped memory for tpu_custom_call.1']
    %10 = vsyncpa [#allocation3], 0
    %s11 = scalar_lea.sflag [#allocation3], 1
    %12 = vsyncpa %s11, 0
    %13 = vsyncpa [#allocation6], 0
    %14 = vsyncpa [#allocation4], 0
    %s15 = scalar_lea.sflag [#allocation4], 1
    %16 = vsyncpa %s15, 0
    %17 = vsyncpa [#allocation10], 0
    %s18 = scalar_lea.sflag [#allocation10], 1
    %19 = vsyncpa %s18, 0
    loop: start=0, step=1, limit=4
    $region2: #{tpu_custom_call.1} parent=1 // loop_pre_header
      _
    $region3: #{tpu_custom_call.1} parent=1 // loop_header
      %s21 = sphi 0, %s25
      %p22 = scmp.ge.s32.totalorder %s21, 4
      %s28 = sphi 0, %s40
      %s29 = sphi 0, %s36
      %s30 = sphi 0, %s28
      %s31 = sphi 0, %s29
      %s32 = sphi 0, %s30
      %s33 = sphi 0, %s31
      %s45 = sphi 0, %s47
      %s48 = sphi 0, %s45
      %s49 = sphi 0, %s48
      %s65 = sphi 0, %s49
      %s69 = sphi 0, %s69
      %s71 = sphi 0, %s69
      %s72 = sphi 0, %s71
      %s86 = sphi 0, %s72
      %s90 = sphi 0, %s90
      %s92 = sphi 0, %s90
      %s93 = sphi 0, %s92
      %s107 = sphi 0, %s93
      %s115 = sphi 0, %s117
      %s118 = sphi 0, %s115
      %s119 = sphi 0, %s118
      %s135 = sphi 0, %s119
      %s141 = sphi 0, %s143
      %s144 = sphi 0, %s141
      %s145 = sphi 0, %s144
      %s161 = sphi 0, %s145
    $region4: #{tpu_custom_call.1} parent=1 // loop_header_branch
      %24 = sbr.rel (%p22) target = $region8
    $region5: #{tpu_custom_call.1} parent=1 // loop_body
      %s26 = ssub.s32 %s21, 1
      %s27 = ssub.s32 %s21, 2
      %s34 = sadd.s32 1, %s29
      %p35 = scmp.ge.s32.totalorder %s34, 1
      %s36 = scalar_select %p35, 0, %s34
      %s37 = sadd.s32 1, %s28
      %s38 = scalar_select %p35, %s37, %s28
      %p39 = scmp.ge.s32.totalorder %s38, 2
      %s40 = scalar_select %p39, 0, %s38
      %s41 = ssub.s32 %s28, %s40
      %s42 = ssub.s32 %s29, %s36
      %s43 = sor.u32 %s41, %s42
      %p44 = scmp.eq.s32.totalorder %s43, 0
      %s46 = sadd.s32 %s45, 1
      %s47 = scalar_select %p44, %s45, %s46
      %p50 = pneg %p44
      %p51 = scmp.eq.s32.totalorder %s21, 1
      %p52 = por %p50, %p51
      %p53 = scmp.ne.s32.totalorder %s45, %s48
      %p54 = scmp.eq.s32.totalorder %s21, 0
      %p55 = por %p53, %p54
      %p56 = scmp.ne.s32.totalorder %s45, %s48
      %p57 = scmp.eq.s32.totalorder %s26, 1
      %p58 = por %p56, %p57
      %p59 = scmp.ne.s32.totalorder %s48, %s49
      %p60 = scmp.eq.s32.totalorder %s26, 0
      %p61 = por %p59, %p60
      %p62 = scmp.ne.s32.totalorder %s48, %s49
      %p63 = scmp.eq.s32.totalorder %s27, 1
      %p64 = por %p62, %p63
      %p66 = scmp.ne.s32.totalorder %s49, %s65
      %p67 = scmp.eq.s32.totalorder %s27, 0
      %p68 = por %p66, %p67
      %s70 = sadd.s32 %s69, 1
      %p73 = scmp.eq.s32.totalorder %s21, 1
      %p74 = scmp.ne.s32.totalorder %s69, %s71
      %p75 = scmp.eq.s32.totalorder %s21, 0
      %p76 = por %p74, %p75
      %p77 = scmp.ne.s32.totalorder %s69, %s71
      %p78 = scmp.eq.s32.totalorder %s26, 1
      %p79 = por %p77, %p78
      %p80 = scmp.ne.s32.totalorder %s71, %s72
      %p81 = scmp.eq.s32.totalorder %s26, 0
      %p82 = por %p80, %p81
      %p83 = scmp.ne.s32.totalorder %s71, %s72
      %p84 = scmp.eq.s32.totalorder %s27, 1
      %p85 = por %p83, %p84
      %p87 = scmp.ne.s32.totalorder %s72, %s86
      %p88 = scmp.eq.s32.totalorder %s27, 0
      %p89 = por %p87, %p88
      %s91 = sadd.s32 %s90, 1
      %p94 = scmp.eq.s32.totalorder %s21, 1
      %p95 = scmp.ne.s32.totalorder %s90, %s92
      %p96 = scmp.eq.s32.totalorder %s21, 0
      %p97 = por %p95, %p96
      %p98 = scmp.ne.s32.totalorder %s90, %s92
      %p99 = scmp.eq.s32.totalorder %s26, 1
      %p100 = por %p98, %p99
      %p101 = scmp.ne.s32.totalorder %s92, %s93
      %p102 = scmp.eq.s32.totalorder %s26, 0
      %p103 = por %p101, %p102
      %p104 = scmp.ne.s32.totalorder %s92, %s93
      %p105 = scmp.eq.s32.totalorder %s27, 1
      %p106 = por %p104, %p105
      %p108 = scmp.ne.s32.totalorder %s93, %s107
      %p109 = scmp.eq.s32.totalorder %s27, 0
      %p110 = por %p108, %p109
      %s111 = ssub.s32 %s28, %s40
      %s112 = ssub.s32 %s29, %s36
      %s113 = sor.u32 %s111, %s112
      %p114 = scmp.eq.s32.totalorder %s113, 0
      %s116 = sadd.s32 %s115, 1
      %s117 = scalar_select %p114, %s115, %s116
      %p120 = pneg %p114
      %p121 = scmp.eq.s32.totalorder %s21, 1
      %p122 = por %p120, %p121
      %p123 = scmp.ne.s32.totalorder %s115, %s118
      %p124 = scmp.eq.s32.totalorder %s21, 0
      %p125 = por %p123, %p124
      %p126 = scmp.ne.s32.totalorder %s115, %s118
      %p127 = scmp.eq.s32.totalorder %s26, 1
      %p128 = por %p126, %p127
      %p129 = scmp.ne.s32.totalorder %s118, %s119
      %p130 = scmp.eq.s32.totalorder %s26, 0
      %p131 = por %p129, %p130
      %p132 = scmp.ne.s32.totalorder %s118, %s119
      %p133 = scmp.eq.s32.totalorder %s27, 1
      %p134 = por %p132, %p133
      %p136 = scmp.ne.s32.totalorder %s119, %s135
      %p137 = scmp.eq.s32.totalorder %s27, 0
      %p138 = por %p136, %p137
      %s139 = ssub.s32 %s28, %s40
      %p140 = scmp.eq.s32.totalorder %s139, 0
      %s142 = sadd.s32 %s141, 1
      %s143 = scalar_select %p140, %s141, %s142
      %p146 = pneg %p140
      %p147 = scmp.eq.s32.totalorder %s21, 1
      %p148 = por %p146, %p147
      %p149 = scmp.ne.s32.totalorder %s141, %s144
      %p150 = scmp.eq.s32.totalorder %s21, 0
      %p151 = por %p149, %p150
      %p152 = scmp.ne.s32.totalorder %s141, %s144
      %p153 = scmp.eq.s32.totalorder %s26, 1
      %p154 = por %p152, %p153
      %p155 = scmp.ne.s32.totalorder %s144, %s145
      %p156 = scmp.eq.s32.totalorder %s26, 0
      %p157 = por %p155, %p156
      %p158 = scmp.ne.s32.totalorder %s144, %s145
      %p159 = scmp.eq.s32.totalorder %s27, 1
      %p160 = por %p158, %p159
      %p162 = scmp.ne.s32.totalorder %s145, %s161
      %p163 = scmp.eq.s32.totalorder %s27, 0
      %p164 = por %p162, %p163
      %p165 = scmp.le.s32.totalorder 1, %s21
      %p166 = scmp.lt.s32.totalorder %s21, 3
      %p167 = pnand %p165, %p166
      %p168 = pneg %p167
      // Predicated region
      $region9: #{tpu_custom_call.1} parent=5 // pred_check
        _
      $region10: #{tpu_custom_call.1} parent=5 // pred_check_branch
        %170 = sbr.rel (%p167) target = $region12
      $region11: #{tpu_custom_call.1} parent=5 // pred_region
        %s171 = ssub.s32 %s21, 1
        // Predicated region
        $region13: #{tpu_custom_call.1} parent=11 // pred_check
          %p172 = pneg %p82
        $region14: #{tpu_custom_call.1} parent=11 // pred_check_branch
          %174 = sbr.rel (%p172) target = $region16
        $region15: #{tpu_custom_call.1} parent=11 // pred_region
          %s176 = ssub.s32 36864, 36864
          %177 = vsyncadd [#allocation6], %s176
          %s178 = sshll.u32 [#allocation5], 4
          %s179 = int_to_ptr.vmem [resolvable:$true] %s178
          %184 = dma.hbm_to_vmem [thread:$0]  %s1, 36864, %s179, [#allocation6], 384, 384, 24
        $region16: #{tpu_custom_call.1} parent=11 // pred_fallthru
          _
        // Predicated region
        $region17: #{tpu_custom_call.1} parent=11 // pred_check
          %p185 = pneg %p103
        $region18: #{tpu_custom_call.1} parent=11 // pred_check_branch
          %187 = sbr.rel (%p185) target = $region20
        $region19: #{tpu_custom_call.1} parent=11 // pred_region
          %s189 = ssub.s32 96, 96
          %190 = vsyncadd [#allocation6], %s189
          %s192 = sshll.u32 [#allocation7], 4
          %s193 = int_to_ptr.vmem [resolvable:$true] %s192
          %195 = dma.hbm_to_vmem [thread:$0]  %s2, 96, %s193, [#allocation6]
        $region20: #{tpu_custom_call.1} parent=11 // pred_fallthru
          _
      $region12: #{tpu_custom_call.1} parent=5 // pred_fallthru
        _
      %p196 = scmp.lt.s32.totalorder %s21, 2
      // Predicated region
      $region21: #{tpu_custom_call.1} parent=5 // pred_check
        %p197 = pneg %p196
      $region22: #{tpu_custom_call.1} parent=5 // pred_check_branch
        %199 = sbr.rel (%p197) target = $region24
      $region23: #{tpu_custom_call.1} parent=5 // pred_region
        // Predicated region
        $region25: #{tpu_custom_call.1} parent=23 // pred_check
          %p200 = pneg %p55
        $region26: #{tpu_custom_call.1} parent=23 // pred_check_branch
          %202 = sbr.rel (%p200) target = $region28
        $region27: #{tpu_custom_call.1} parent=23 // pred_region
          %s203 = sand.u32 %s45, 1
          %s204 = scalar_lea.sflag [#allocation3], %s203
          %s205 = sand.u32 %s45, 1
          %s206 = smul.addr %s205, 24
          %s207 = scalar_lea.vmem [#allocation2], %s206
          %s209 = ssub.s32 384, 384
          %210 = vsyncadd %s204, %s209
          %s211 = smul.addr %s29, 6
          %s212 = smul.addr %s28, 6
          %s213 = sadd.s32 %s211, %s212
          %s214 = smul.addr %s213, 64
          %s215 = scalar_lea.hbm %s0, %s214
          %s217 = sshll.u32 %s207, 4
          %s218 = int_to_ptr.vmem [resolvable:$true] %s217
          %220 = dma.hbm_to_vmem [thread:$0]  %s215, 384, %s218, %s204
        $region28: #{tpu_custom_call.1} parent=23 // pred_fallthru
          _
      $region24: #{tpu_custom_call.1} parent=5 // pred_fallthru
        _
      %p221 = scmp.le.s32.totalorder 1, %s21
      %p222 = scmp.lt.s32.totalorder %s21, 3
      %p223 = pnand %p221, %p222
      %p224 = pneg %p223
      // Predicated region
      $region29: #{tpu_custom_call.1} parent=5 // pred_check
        _
      $region30: #{tpu_custom_call.1} parent=5 // pred_check_branch
        %226 = sbr.rel (%p223) target = $region32
      $region31: #{tpu_custom_call.1} parent=5 // pred_region
        %s227 = ssub.s32 %s21, 1
        %s228 = sand.u32 %s48, 1
        %s229 = scalar_lea.sflag [#allocation3], %s228
        %s230 = sand.u32 %s48, 1
        %s231 = smul.addr %s230, 24
        %s232 = scalar_lea.vmem [#allocation2], %s231
        // Predicated region
        $region33: #{tpu_custom_call.1} parent=31 // pred_check
          %p233 = pneg %p61
        $region34: #{tpu_custom_call.1} parent=31 // pred_check_branch
          %235 = sbr.rel (%p233) target = $region36
        $region35: #{tpu_custom_call.1} parent=31 // pred_region
          %236 = dma.done %s229, 384
        $region36: #{tpu_custom_call.1} parent=31 // pred_fallthru
          _
        // Predicated region
        $region37: #{tpu_custom_call.1} parent=31 // pred_check
          %p237 = pneg %p82
        $region38: #{tpu_custom_call.1} parent=31 // pred_check_branch
          %239 = sbr.rel (%p237) target = $region40
        $region39: #{tpu_custom_call.1} parent=31 // pred_region
          %240 = dma.done [#allocation6], 36864
        $region40: #{tpu_custom_call.1} parent=31 // pred_fallthru
          _
        // Predicated region
        $region41: #{tpu_custom_call.1} parent=31 // pred_check
          %p241 = pneg %p103
        $region42: #{tpu_custom_call.1} parent=31 // pred_check_branch
          %243 = sbr.rel (%p241) target = $region44
        $region43: #{tpu_custom_call.1} parent=31 // pred_region
          %244 = dma.done [#allocation6], 96
        $region44: #{tpu_custom_call.1} parent=31 // pred_fallthru
          _
        %s245 = sand.u32 %s48, 1
        %s246 = scalar_lea.sflag [#allocation3], %s245
        %s247 = sand.u32 %s48, 1
        %s248 = smul.addr %s247, 24
        %s249 = scalar_lea.vmem [#allocation2], %s248
        %p250 = pneg %p61
        %p251 = pneg %p58
        %p252 = pneg %p82
        %p253 = pneg %p79
        %p254 = pneg %p103
        %p255 = pneg %p100
        %p256 = pneg %p131
        %p257 = pneg %p128
        %s258 = sand.u32 %s118, 1
        %s259 = scalar_lea.sflag [#allocation4], %s258
        %s260 = sand.u32 %s118, 1
        %s261 = smul.addr %s260, 24
        %s262 = scalar_lea.vmem [#allocation8], %s261
        %p263 = pneg %p157
        %p264 = pneg %p154
        %s265 = sand.u32 %s144, 1
        %s266 = scalar_lea.sflag [#allocation10], %s265
        %s267 = sand.u32 %s144, 1
        %s268 = smul.addr %s267, 6
        %s269 = scalar_lea.vmem [#allocation9], %s268
        %p270 = scmp.eq.s32.totalorder %s31, 0
        // Predicated region
        $region45: #{tpu_custom_call.1} parent=31 // pred_check
          %p271 = pneg %p270
        $region46: #{tpu_custom_call.1} parent=31 // pred_check_branch
          %273 = sbr.rel (%p271) target = $region48
        $region47: #{tpu_custom_call.1} parent=31 // pred_region
          %v274 = vlaneseq
          %vm275 = vcmp.ge.s32.totalorder %v274, 0
          %vm276 = vcmp.lt.s32.totalorder %v274, 768
          %vm277 = vmand %vm275, %vm276
          %278 = vst.msk [vmem:[%s269] sm:$0x3f] %vm277, 0.0
        $region48: #{tpu_custom_call.1} parent=31 // pred_fallthru
          _
        %v279 = vld [vmem:[%s232] sm:$0xff]
        %v280 = vld [vmem:[%s232 + $0x8] sm:$0xff]
        %v281 = vld [vmem:[%s232 + $0x10] sm:$0xff]
        %v282 = vld [vmem:[#allocation5] sm:$0xff]
        %v283 = vld [vmem:[#allocation5 + $0x8] sm:$0xff]
        %v284 = vld [vmem:[#allocation5 + $0x10] sm:$0xff]
        %v285 = vld [vmem:[#allocation5 + $0x18] sm:$0xff]
        %v286 = vld [vmem:[#allocation5 + $0x20] sm:$0xff]
        %v287 = vld [vmem:[#allocation5 + $0x28] sm:$0xff]
        %v288 = vld [vmem:[#allocation5 + $0x30] sm:$0xff]
        %v289 = vld [vmem:[#allocation5 + $0x38] sm:$0xff]
        %v290 = vld [vmem:[#allocation5 + $0x40] sm:$0xff]
        %v291 = vld [vmem:[#allocation5 + $0x48] sm:$0xff]
        %v292 = vld [vmem:[#allocation5 + $0x50] sm:$0xff]
        %v293 = vld [vmem:[#allocation5 + $0x58] sm:$0xff]
        %v294 = vld [vmem:[#allocation5 + $0x60] sm:$0xff]
        %v295 = vld [vmem:[#allocation5 + $0x68] sm:$0xff]
        %v296 = vld [vmem:[#allocation5 + $0x70] sm:$0xff]
        %v297 = vld [vmem:[#allocation5 + $0x78] sm:$0xff]
        %v298 = vld [vmem:[#allocation5 + $0x80] sm:$0xff]
        %v299 = vld [vmem:[#allocation5 + $0x88] sm:$0xff]
        %v300 = vld [vmem:[#allocation5 + $0x90] sm:$0xff]
        %v301 = vld [vmem:[#allocation5 + $0x98] sm:$0xff]
        %v302 = vld [vmem:[#allocation5 + $0xa0] sm:$0xff]
        %v303 = vld [vmem:[#allocation5 + $0xa8] sm:$0xff]
        %v304 = vld [vmem:[#allocation5 + $0xb0] sm:$0xff]
        %v305 = vld [vmem:[#allocation5 + $0xb8] sm:$0xff]
        %v306 = vld [vmem:[#allocation5 + $0xc0] sm:$0xff]
        %v307 = vld [vmem:[#allocation5 + $0xc8] sm:$0xff]
        %v308 = vld [vmem:[#allocation5 + $0xd0] sm:$0xff]
        %v309 = vld [vmem:[#allocation5 + $0xd8] sm:$0xff]
        %v310 = vld [vmem:[#allocation5 + $0xe0] sm:$0xff]
        %v311 = vld [vmem:[#allocation5 + $0xe8] sm:$0xff]
        %v312 = vld [vmem:[#allocation5 + $0xf0] sm:$0xff]
        %v313 = vld [vmem:[#allocation5 + $0xf8] sm:$0xff]
        %v314 = vld [vmem:[#allocation5 + $0x100] sm:$0xff]
        %v315 = vld [vmem:[#allocation5 + $0x108] sm:$0xff]
        %v316 = vld [vmem:[#allocation5 + $0x110] sm:$0xff]
        %v317 = vld [vmem:[#allocation5 + $0x118] sm:$0xff]
        %v318 = vld [vmem:[#allocation5 + $0x120] sm:$0xff]
        %v319 = vld [vmem:[#allocation5 + $0x128] sm:$0xff]
        %v320 = vld [vmem:[#allocation5 + $0x130] sm:$0xff]
        %v321 = vld [vmem:[#allocation5 + $0x138] sm:$0xff]
        %v322 = vld [vmem:[#allocation5 + $0x140] sm:$0xff]
        %v323 = vld [vmem:[#allocation5 + $0x148] sm:$0xff]
        %v324 = vld [vmem:[#allocation5 + $0x150] sm:$0xff]
        %v325 = vld [vmem:[#allocation5 + $0x158] sm:$0xff]
        %v326 = vld [vmem:[#allocation5 + $0x160] sm:$0xff]
        %v327 = vld [vmem:[#allocation5 + $0x168] sm:$0xff]
        %v328 = vld [vmem:[#allocation5 + $0x170] sm:$0xff]
        %v329 = vld [vmem:[#allocation5 + $0x178] sm:$0xff]
        %v330 = vld [vmem:[#allocation5 + $0x180] sm:$0xff]
        %v331 = vld [vmem:[#allocation5 + $0x188] sm:$0xff]
        %v332 = vld [vmem:[#allocation5 + $0x190] sm:$0xff]
        %v333 = vld [vmem:[#allocation5 + $0x198] sm:$0xff]
        %v334 = vld [vmem:[#allocation5 + $0x1a0] sm:$0xff]
        %v335 = vld [vmem:[#allocation5 + $0x1a8] sm:$0xff]
        %v336 = vld [vmem:[#allocation5 + $0x1b0] sm:$0xff]
        %v337 = vld [vmem:[#allocation5 + $0x1b8] sm:$0xff]
        %v338 = vld [vmem:[#allocation5 + $0x1c0] sm:$0xff]
        %v339 = vld [vmem:[#allocation5 + $0x1c8] sm:$0xff]
        %v340 = vld [vmem:[#allocation5 + $0x1d0] sm:$0xff]
        %v341 = vld [vmem:[#allocation5 + $0x1d8] sm:$0xff]
        %v342 = vld [vmem:[#allocation5 + $0x1e0] sm:$0xff]
        %v343 = vld [vmem:[#allocation5 + $0x1e8] sm:$0xff]
        %v344 = vld [vmem:[#allocation5 + $0x1f0] sm:$0xff]
        %v345 = vld [vmem:[#allocation5 + $0x1f8] sm:$0xff]
        %v346 = vld [vmem:[#allocation5 + $0x200] sm:$0xff]
        %v347 = vld [vmem:[#allocation5 + $0x208] sm:$0xff]
        %v348 = vld [vmem:[#allocation5 + $0x210] sm:$0xff]
        %v349 = vld [vmem:[#allocation5 + $0x218] sm:$0xff]
        %v350 = vld [vmem:[#allocation5 + $0x220] sm:$0xff]
        %v351 = vld [vmem:[#allocation5 + $0x228] sm:$0xff]
        %v352 = vld [vmem:[#allocation5 + $0x230] sm:$0xff]
        %v353 = vld [vmem:[#allocation5 + $0x238] sm:$0xff]
        %v354 = vld [vmem:[#allocation5 + $0x240] sm:$0xff]
        %v355 = vld [vmem:[#allocation5 + $0x248] sm:$0xff]
        %v356 = vld [vmem:[#allocation5 + $0x250] sm:$0xff]
        %v357 = vld [vmem:[#allocation5 + $0x258] sm:$0xff]
        %v358 = vld [vmem:[#allocation5 + $0x260] sm:$0xff]
        %v359 = vld [vmem:[#allocation5 + $0x268] sm:$0xff]
        %v360 = vld [vmem:[#allocation5 + $0x270] sm:$0xff]
        %v361 = vld [vmem:[#allocation5 + $0x278] sm:$0xff]
        %v362 = vld [vmem:[#allocation5 + $0x280] sm:$0xff]
        %v363 = vld [vmem:[#allocation5 + $0x288] sm:$0xff]
        %v364 = vld [vmem:[#allocation5 + $0x290] sm:$0xff]
        %v365 = vld [vmem:[#allocation5 + $0x298] sm:$0xff]
        %v366 = vld [vmem:[#allocation5 + $0x2a0] sm:$0xff]
        %v367 = vld [vmem:[#allocation5 + $0x2a8] sm:$0xff]
        %v368 = vld [vmem:[#allocation5 + $0x2b0] sm:$0xff]
        %v369 = vld [vmem:[#allocation5 + $0x2b8] sm:$0xff]
        %v370 = vld [vmem:[#allocation5 + $0x2c0] sm:$0xff]
        %v371 = vld [vmem:[#allocation5 + $0x2c8] sm:$0xff]
        %v372 = vld [vmem:[#allocation5 + $0x2d0] sm:$0xff]
        %v373 = vld [vmem:[#allocation5 + $0x2d8] sm:$0xff]
        %v374 = vld [vmem:[#allocation5 + $0x2e0] sm:$0xff]
        %v375 = vld [vmem:[#allocation5 + $0x2e8] sm:$0xff]
        %v376 = vld [vmem:[#allocation5 + $0x2f0] sm:$0xff]
        %v377 = vld [vmem:[#allocation5 + $0x2f8] sm:$0xff]
        %v378 = vld [vmem:[#allocation5 + $0x300] sm:$0xff]
        %v379 = vld [vmem:[#allocation5 + $0x308] sm:$0xff]
        %v380 = vld [vmem:[#allocation5 + $0x310] sm:$0xff]
        %v381 = vld [vmem:[#allocation5 + $0x318] sm:$0xff]
        %v382 = vld [vmem:[#allocation5 + $0x320] sm:$0xff]
        %v383 = vld [vmem:[#allocation5 + $0x328] sm:$0xff]
        %v384 = vld [vmem:[#allocation5 + $0x330] sm:$0xff]
        %v385 = vld [vmem:[#allocation5 + $0x338] sm:$0xff]
        %v386 = vld [vmem:[#allocation5 + $0x340] sm:$0xff]
        %v387 = vld [vmem:[#allocation5 + $0x348] sm:$0xff]
        %v388 = vld [vmem:[#allocation5 + $0x350] sm:$0xff]
        %v389 = vld [vmem:[#allocation5 + $0x358] sm:$0xff]
        %v390 = vld [vmem:[#allocation5 + $0x360] sm:$0xff]
        %v391 = vld [vmem:[#allocation5 + $0x368] sm:$0xff]
        %v392 = vld [vmem:[#allocation5 + $0x370] sm:$0xff]
        %v393 = vld [vmem:[#allocation5 + $0x378] sm:$0xff]
        %v394 = vld [vmem:[#allocation5 + $0x380] sm:$0xff]
        %v395 = vld [vmem:[#allocation5 + $0x388] sm:$0xff]
        %v396 = vld [vmem:[#allocation5 + $0x390] sm:$0xff]
        %v397 = vld [vmem:[#allocation5 + $0x398] sm:$0xff]
        %v398 = vld [vmem:[#allocation5 + $0x3a0] sm:$0xff]
        %v399 = vld [vmem:[#allocation5 + $0x3a8] sm:$0xff]
        %v400 = vld [vmem:[#allocation5 + $0x3b0] sm:$0xff]
        %v401 = vld [vmem:[#allocation5 + $0x3b8] sm:$0xff]
        %v402 = vld [vmem:[#allocation5 + $0x3c0] sm:$0xff]
        %v403 = vld [vmem:[#allocation5 + $0x3c8] sm:$0xff]
        %v404 = vld [vmem:[#allocation5 + $0x3d0] sm:$0xff]
        %v405 = vld [vmem:[#allocation5 + $0x3d8] sm:$0xff]
        %v406 = vld [vmem:[#allocation5 + $0x3e0] sm:$0xff]
        %v407 = vld [vmem:[#allocation5 + $0x3e8] sm:$0xff]
        %v408 = vld [vmem:[#allocation5 + $0x3f0] sm:$0xff]
        %v409 = vld [vmem:[#allocation5 + $0x3f8] sm:$0xff]
        %v410 = vld [vmem:[#allocation5 + $0x400] sm:$0xff]
        %v411 = vld [vmem:[#allocation5 + $0x408] sm:$0xff]
        %v412 = vld [vmem:[#allocation5 + $0x410] sm:$0xff]
        %v413 = vld [vmem:[#allocation5 + $0x418] sm:$0xff]
        %v414 = vld [vmem:[#allocation5 + $0x420] sm:$0xff]
        %v415 = vld [vmem:[#allocation5 + $0x428] sm:$0xff]
        %v416 = vld [vmem:[#allocation5 + $0x430] sm:$0xff]
        %v417 = vld [vmem:[#allocation5 + $0x438] sm:$0xff]
        %v418 = vld [vmem:[#allocation5 + $0x440] sm:$0xff]
        %v419 = vld [vmem:[#allocation5 + $0x448] sm:$0xff]
        %v420 = vld [vmem:[#allocation5 + $0x450] sm:$0xff]
        %v421 = vld [vmem:[#allocation5 + $0x458] sm:$0xff]
        %v422 = vld [vmem:[#allocation5 + $0x460] sm:$0xff]
        %v423 = vld [vmem:[#allocation5 + $0x468] sm:$0xff]
        %v424 = vld [vmem:[#allocation5 + $0x470] sm:$0xff]
        %v425 = vld [vmem:[#allocation5 + $0x478] sm:$0xff]
        %v426 = vld [vmem:[#allocation5 + $0x480] sm:$0xff]
        %v427 = vld [vmem:[#allocation5 + $0x488] sm:$0xff]
        %v428 = vld [vmem:[#allocation5 + $0x490] sm:$0xff]
        %v429 = vld [vmem:[#allocation5 + $0x498] sm:$0xff]
        %v430 = vld [vmem:[#allocation5 + $0x4a0] sm:$0xff]
        %v431 = vld [vmem:[#allocation5 + $0x4a8] sm:$0xff]
        %v432 = vld [vmem:[#allocation5 + $0x4b0] sm:$0xff]
        %v433 = vld [vmem:[#allocation5 + $0x4b8] sm:$0xff]
        %v434 = vld [vmem:[#allocation5 + $0x4c0] sm:$0xff]
        %v435 = vld [vmem:[#allocation5 + $0x4c8] sm:$0xff]
        %v436 = vld [vmem:[#allocation5 + $0x4d0] sm:$0xff]
        %v437 = vld [vmem:[#allocation5 + $0x4d8] sm:$0xff]
        %v438 = vld [vmem:[#allocation5 + $0x4e0] sm:$0xff]
        %v439 = vld [vmem:[#allocation5 + $0x4e8] sm:$0xff]
        %v440 = vld [vmem:[#allocation5 + $0x4f0] sm:$0xff]
        %v441 = vld [vmem:[#allocation5 + $0x4f8] sm:$0xff]
        %v442 = vld [vmem:[#allocation5 + $0x500] sm:$0xff]
        %v443 = vld [vmem:[#allocation5 + $0x508] sm:$0xff]
        %v444 = vld [vmem:[#allocation5 + $0x510] sm:$0xff]
        %v445 = vld [vmem:[#allocation5 + $0x518] sm:$0xff]
        %v446 = vld [vmem:[#allocation5 + $0x520] sm:$0xff]
        %v447 = vld [vmem:[#allocation5 + $0x528] sm:$0xff]
        %v448 = vld [vmem:[#allocation5 + $0x530] sm:$0xff]
        %v449 = vld [vmem:[#allocation5 + $0x538] sm:$0xff]
        %v450 = vld [vmem:[#allocation5 + $0x540] sm:$0xff]
        %v451 = vld [vmem:[#allocation5 + $0x548] sm:$0xff]
        %v452 = vld [vmem:[#allocation5 + $0x550] sm:$0xff]
        %v453 = vld [vmem:[#allocation5 + $0x558] sm:$0xff]
        %v454 = vld [vmem:[#allocation5 + $0x560] sm:$0xff]
        %v455 = vld [vmem:[#allocation5 + $0x568] sm:$0xff]
        %v456 = vld [vmem:[#allocation5 + $0x570] sm:$0xff]
        %v457 = vld [vmem:[#allocation5 + $0x578] sm:$0xff]
        %v458 = vld [vmem:[#allocation5 + $0x580] sm:$0xff]
        %v459 = vld [vmem:[#allocation5 + $0x588] sm:$0xff]
        %v460 = vld [vmem:[#allocation5 + $0x590] sm:$0xff]
        %v461 = vld [vmem:[#allocation5 + $0x598] sm:$0xff]
        %v462 = vld [vmem:[#allocation5 + $0x5a0] sm:$0xff]
        %v463 = vld [vmem:[#allocation5 + $0x5a8] sm:$0xff]
        %v464 = vld [vmem:[#allocation5 + $0x5b0] sm:$0xff]
        %v465 = vld [vmem:[#allocation5 + $0x5b8] sm:$0xff]
        %v466 = vld [vmem:[#allocation5 + $0x5c0] sm:$0xff]
        %v467 = vld [vmem:[#allocation5 + $0x5c8] sm:$0xff]
        %v468 = vld [vmem:[#allocation5 + $0x5d0] sm:$0xff]
        %v469 = vld [vmem:[#allocation5 + $0x5d8] sm:$0xff]
        %v470 = vld [vmem:[#allocation5 + $0x5e0] sm:$0xff]
        %v471 = vld [vmem:[#allocation5 + $0x5e8] sm:$0xff]
        %v472 = vld [vmem:[#allocation5 + $0x5f0] sm:$0xff]
        %v473 = vld [vmem:[#allocation5 + $0x5f8] sm:$0xff]
        %v474 = vld [vmem:[#allocation5 + $0x600] sm:$0xff]
        %v475 = vld [vmem:[#allocation5 + $0x608] sm:$0xff]
        %v476 = vld [vmem:[#allocation5 + $0x610] sm:$0xff]
        %v477 = vld [vmem:[#allocation5 + $0x618] sm:$0xff]
        %v478 = vld [vmem:[#allocation5 + $0x620] sm:$0xff]
        %v479 = vld [vmem:[#allocation5 + $0x628] sm:$0xff]
        %v480 = vld [vmem:[#allocation5 + $0x630] sm:$0xff]
        %v481 = vld [vmem:[#allocation5 + $0x638] sm:$0xff]
        %v482 = vld [vmem:[#allocation5 + $0x640] sm:$0xff]
        %v483 = vld [vmem:[#allocation5 + $0x648] sm:$0xff]
        %v484 = vld [vmem:[#allocation5 + $0x650] sm:$0xff]
        %v485 = vld [vmem:[#allocation5 + $0x658] sm:$0xff]
        %v486 = vld [vmem:[#allocation5 + $0x660] sm:$0xff]
        %v487 = vld [vmem:[#allocation5 + $0x668] sm:$0xff]
        %v488 = vld [vmem:[#allocation5 + $0x670] sm:$0xff]
        %v489 = vld [vmem:[#allocation5 + $0x678] sm:$0xff]
        %v490 = vld [vmem:[#allocation5 + $0x680] sm:$0xff]
        %v491 = vld [vmem:[#allocation5 + $0x688] sm:$0xff]
        %v492 = vld [vmem:[#allocation5 + $0x690] sm:$0xff]
        %v493 = vld [vmem:[#allocation5 + $0x698] sm:$0xff]
        %v494 = vld [vmem:[#allocation5 + $0x6a0] sm:$0xff]
        %v495 = vld [vmem:[#allocation5 + $0x6a8] sm:$0xff]
        %v496 = vld [vmem:[#allocation5 + $0x6b0] sm:$0xff]
        %v497 = vld [vmem:[#allocation5 + $0x6b8] sm:$0xff]
        %v498 = vld [vmem:[#allocation5 + $0x6c0] sm:$0xff]
        %v499 = vld [vmem:[#allocation5 + $0x6c8] sm:$0xff]
        %v500 = vld [vmem:[#allocation5 + $0x6d0] sm:$0xff]
        %v501 = vld [vmem:[#allocation5 + $0x6d8] sm:$0xff]
        %v502 = vld [vmem:[#allocation5 + $0x6e0] sm:$0xff]
        %v503 = vld [vmem:[#allocation5 + $0x6e8] sm:$0xff]
        %v504 = vld [vmem:[#allocation5 + $0x6f0] sm:$0xff]
        %v505 = vld [vmem:[#allocation5 + $0x6f8] sm:$0xff]
        %v506 = vld [vmem:[#allocation5 + $0x700] sm:$0xff]
        %v507 = vld [vmem:[#allocation5 + $0x708] sm:$0xff]
        %v508 = vld [vmem:[#allocation5 + $0x710] sm:$0xff]
        %v509 = vld [vmem:[#allocation5 + $0x718] sm:$0xff]
        %v510 = vld [vmem:[#allocation5 + $0x720] sm:$0xff]
        %v511 = vld [vmem:[#allocation5 + $0x728] sm:$0xff]
        %v512 = vld [vmem:[#allocation5 + $0x730] sm:$0xff]
        %v513 = vld [vmem:[#allocation5 + $0x738] sm:$0xff]
        %v514 = vld [vmem:[#allocation5 + $0x740] sm:$0xff]
        %v515 = vld [vmem:[#allocation5 + $0x748] sm:$0xff]
        %v516 = vld [vmem:[#allocation5 + $0x750] sm:$0xff]
        %v517 = vld [vmem:[#allocation5 + $0x758] sm:$0xff]
        %v518 = vld [vmem:[#allocation5 + $0x760] sm:$0xff]
        %v519 = vld [vmem:[#allocation5 + $0x768] sm:$0xff]
        %v520 = vld [vmem:[#allocation5 + $0x770] sm:$0xff]
        %v521 = vld [vmem:[#allocation5 + $0x778] sm:$0xff]
        %v522 = vld [vmem:[#allocation5 + $0x780] sm:$0xff]
        %v523 = vld [vmem:[#allocation5 + $0x788] sm:$0xff]
        %v524 = vld [vmem:[#allocation5 + $0x790] sm:$0xff]
        %v525 = vld [vmem:[#allocation5 + $0x798] sm:$0xff]
        %v526 = vld [vmem:[#allocation5 + $0x7a0] sm:$0xff]
        %v527 = vld [vmem:[#allocation5 + $0x7a8] sm:$0xff]
        %v528 = vld [vmem:[#allocation5 + $0x7b0] sm:$0xff]
        %v529 = vld [vmem:[#allocation5 + $0x7b8] sm:$0xff]
        %v530 = vld [vmem:[#allocation5 + $0x7c0] sm:$0xff]
        %v531 = vld [vmem:[#allocation5 + $0x7c8] sm:$0xff]
        %v532 = vld [vmem:[#allocation5 + $0x7d0] sm:$0xff]
        %v533 = vld [vmem:[#allocation5 + $0x7d8] sm:$0xff]
        %v534 = vld [vmem:[#allocation5 + $0x7e0] sm:$0xff]
        %v535 = vld [vmem:[#allocation5 + $0x7e8] sm:$0xff]
        %v536 = vld [vmem:[#allocation5 + $0x7f0] sm:$0xff]
        %v537 = vld [vmem:[#allocation5 + $0x7f8] sm:$0xff]
        %v538 = vld [vmem:[#allocation5 + $0x800] sm:$0xff]
        %v539 = vld [vmem:[#allocation5 + $0x808] sm:$0xff]
        %v540 = vld [vmem:[#allocation5 + $0x810] sm:$0xff]
        %v541 = vld [vmem:[#allocation5 + $0x818] sm:$0xff]
        %v542 = vld [vmem:[#allocation5 + $0x820] sm:$0xff]
        %v543 = vld [vmem:[#allocation5 + $0x828] sm:$0xff]
        %v544 = vld [vmem:[#allocation5 + $0x830] sm:$0xff]
        %v545 = vld [vmem:[#allocation5 + $0x838] sm:$0xff]
        %v546 = vld [vmem:[#allocation5 + $0x840] sm:$0xff]
        %v547 = vld [vmem:[#allocation5 + $0x848] sm:$0xff]
        %v548 = vld [vmem:[#allocation5 + $0x850] sm:$0xff]
        %v549 = vld [vmem:[#allocation5 + $0x858] sm:$0xff]
        %v550 = vld [vmem:[#allocation5 + $0x860] sm:$0xff]
        %v551 = vld [vmem:[#allocation5 + $0x868] sm:$0xff]
        %v552 = vld [vmem:[#allocation5 + $0x870] sm:$0xff]
        %v553 = vld [vmem:[#allocation5 + $0x878] sm:$0xff]
        %v554 = vld [vmem:[#allocation5 + $0x880] sm:$0xff]
        %v555 = vld [vmem:[#allocation5 + $0x888] sm:$0xff]
        %v556 = vld [vmem:[#allocation5 + $0x890] sm:$0xff]
        %v557 = vld [vmem:[#allocation5 + $0x898] sm:$0xff]
        %v558 = vld [vmem:[#allocation5 + $0x8a0] sm:$0xff]
        %v559 = vld [vmem:[#allocation5 + $0x8a8] sm:$0xff]
        %v560 = vld [vmem:[#allocation5 + $0x8b0] sm:$0xff]
        %v561 = vld [vmem:[#allocation5 + $0x8b8] sm:$0xff]
        %v562 = vld [vmem:[#allocation5 + $0x8c0] sm:$0xff]
        %v563 = vld [vmem:[#allocation5 + $0x8c8] sm:$0xff]
        %v564 = vld [vmem:[#allocation5 + $0x8d0] sm:$0xff]
        %v565 = vld [vmem:[#allocation5 + $0x8d8] sm:$0xff]
        %v566 = vld [vmem:[#allocation5 + $0x8e0] sm:$0xff]
        %v567 = vld [vmem:[#allocation5 + $0x8e8] sm:$0xff]
        %v568 = vld [vmem:[#allocation5 + $0x8f0] sm:$0xff]
        %v569 = vld [vmem:[#allocation5 + $0x8f8] sm:$0xff]
        %v570 = vld [vmem:[#allocation7] sm:$0x3f]
        %v572 = vlaneseq
        %v573 = vshrl.u32 %v572, 7
        %v574 = vsub.s32 0, %v573
        %v575 = vrot.slane %v570, %v574
        %v576 = vlaneseq
        %v577 = vshrl.u32 %v576, 7
        %v578 = vsub.s32 1, %v577
        %v579 = vrot.slane %v570, %v578
        %v580 = vlaneseq
        %v581 = vshrl.u32 %v580, 7
        %v582 = vsub.s32 2, %v581
        %v583 = vrot.slane %v570, %v582
        %v584 = vlaneseq
        %v585 = vshrl.u32 %v584, 7
        %v586 = vsub.s32 3, %v585
        %v587 = vrot.slane %v570, %v586
        %v588 = vlaneseq
        %v589 = vshrl.u32 %v588, 7
        %v590 = vsub.s32 4, %v589
        %v591 = vrot.slane %v570, %v590
        %v592 = vlaneseq
        %v593 = vshrl.u32 %v592, 7
        %v594 = vsub.s32 5, %v593
        %v595 = vrot.slane %v570, %v594
        %v605 = vunpack.c.l.b16 %v279
        %v606 = vunpack.c.h.b16 %v279
        %v607 = vunpack.c.l.b16 %v280
        %v608 = vunpack.c.h.b16 %v280
        %v609 = vunpack.c.l.b16 %v281
        %v610 = vunpack.c.h.b16 %v281
        %v611 = vpack.c.b16 %v605, %v605
        %v612 = vpack.c.b16 %v606, %v606
        %v613 = vpack.c.b16 %v607, %v607
        %v614 = vpack.c.b16 %v608, %v608
        %v615 = vpack.c.b16 %v609, %v609
        %v616 = vpack.c.b16 %v610, %v610
        %v911 = vunpack.c.l.b16 %v282
        %v912 = vunpack.c.h.b16 %v282
        %v913 = vunpack.c.l.b16 %v283
        %v914 = vunpack.c.h.b16 %v283
        %v915 = vunpack.c.l.b16 %v284
        %v916 = vunpack.c.h.b16 %v284
        %v917 = vunpack.c.l.b16 %v285
        %v918 = vunpack.c.h.b16 %v285
        %v919 = vunpack.c.l.b16 %v286
        %v920 = vunpack.c.h.b16 %v286
        %v921 = vunpack.c.l.b16 %v287
        %v922 = vunpack.c.h.b16 %v287
        %v923 = vunpack.c.l.b16 %v288
        %v924 = vunpack.c.h.b16 %v288
        %v925 = vunpack.c.l.b16 %v289
        %v926 = vunpack.c.h.b16 %v289
        %v927 = vunpack.c.l.b16 %v290
        %v928 = vunpack.c.h.b16 %v290
        %v929 = vunpack.c.l.b16 %v291
        %v930 = vunpack.c.h.b16 %v291
        %v931 = vunpack.c.l.b16 %v292
        %v932 = vunpack.c.h.b16 %v292
        %v933 = vunpack.c.l.b16 %v293
        %v934 = vunpack.c.h.b16 %v293
        %v935 = vunpack.c.l.b16 %v294
        %v936 = vunpack.c.h.b16 %v294
        %v937 = vunpack.c.l.b16 %v295
        %v938 = vunpack.c.h.b16 %v295
        %v939 = vunpack.c.l.b16 %v296
        %v940 = vunpack.c.h.b16 %v296
        %v941 = vunpack.c.l.b16 %v297
        %v942 = vunpack.c.h.b16 %v297
        %v943 = vunpack.c.l.b16 %v298
        %v944 = vunpack.c.h.b16 %v298
        %v945 = vunpack.c.l.b16 %v299
        %v946 = vunpack.c.h.b16 %v299
        %v947 = vunpack.c.l.b16 %v300
        %v948 = vunpack.c.h.b16 %v300
        %v949 = vunpack.c.l.b16 %v301
        %v950 = vunpack.c.h.b16 %v301
        %v951 = vunpack.c.l.b16 %v302
        %v952 = vunpack.c.h.b16 %v302
        %v953 = vunpack.c.l.b16 %v303
        %v954 = vunpack.c.h.b16 %v303
        %v955 = vunpack.c.l.b16 %v304
        %v956 = vunpack.c.h.b16 %v304
        %v957 = vunpack.c.l.b16 %v305
        %v958 = vunpack.c.h.b16 %v305
        %v959 = vunpack.c.l.b16 %v306
        %v960 = vunpack.c.h.b16 %v306
        %v961 = vunpack.c.l.b16 %v307
        %v962 = vunpack.c.h.b16 %v307
        %v963 = vunpack.c.l.b16 %v308
        %v964 = vunpack.c.h.b16 %v308
        %v965 = vunpack.c.l.b16 %v309
        %v966 = vunpack.c.h.b16 %v309
        %v967 = vunpack.c.l.b16 %v310
        %v968 = vunpack.c.h.b16 %v310
        %v969 = vunpack.c.l.b16 %v311
        %v970 = vunpack.c.h.b16 %v311
        %v971 = vunpack.c.l.b16 %v312
        %v972 = vunpack.c.h.b16 %v312
        %v973 = vunpack.c.l.b16 %v313
        %v974 = vunpack.c.h.b16 %v313
        %v975 = vunpack.c.l.b16 %v314
        %v976 = vunpack.c.h.b16 %v314
        %v977 = vunpack.c.l.b16 %v315
        %v978 = vunpack.c.h.b16 %v315
        %v979 = vunpack.c.l.b16 %v316
        %v980 = vunpack.c.h.b16 %v316
        %v981 = vunpack.c.l.b16 %v317
        %v982 = vunpack.c.h.b16 %v317
        %v983 = vunpack.c.l.b16 %v318
        %v984 = vunpack.c.h.b16 %v318
        %v985 = vunpack.c.l.b16 %v319
        %v986 = vunpack.c.h.b16 %v319
        %v987 = vunpack.c.l.b16 %v320
        %v988 = vunpack.c.h.b16 %v320
        %v989 = vunpack.c.l.b16 %v321
        %v990 = vunpack.c.h.b16 %v321
        %v991 = vunpack.c.l.b16 %v322
        %v992 = vunpack.c.h.b16 %v322
        %v993 = vunpack.c.l.b16 %v323
        %v994 = vunpack.c.h.b16 %v323
        %v995 = vunpack.c.l.b16 %v324
        %v996 = vunpack.c.h.b16 %v324
        %v997 = vunpack.c.l.b16 %v325
        %v998 = vunpack.c.h.b16 %v325
        %v999 = vunpack.c.l.b16 %v326
        %v1000 = vunpack.c.h.b16 %v326
        %v1001 = vunpack.c.l.b16 %v327
        %v1002 = vunpack.c.h.b16 %v327
        %v1003 = vunpack.c.l.b16 %v328
        %v1004 = vunpack.c.h.b16 %v328
        %v1005 = vunpack.c.l.b16 %v329
        %v1006 = vunpack.c.h.b16 %v329
        %v1007 = vunpack.c.l.b16 %v330
        %v1008 = vunpack.c.h.b16 %v330
        %v1009 = vunpack.c.l.b16 %v331
        %v1010 = vunpack.c.h.b16 %v331
        %v1011 = vunpack.c.l.b16 %v332
        %v1012 = vunpack.c.h.b16 %v332
        %v1013 = vunpack.c.l.b16 %v333
        %v1014 = vunpack.c.h.b16 %v333
        %v1015 = vunpack.c.l.b16 %v334
        %v1016 = vunpack.c.h.b16 %v334
        %v1017 = vunpack.c.l.b16 %v335
        %v1018 = vunpack.c.h.b16 %v335
        %v1019 = vunpack.c.l.b16 %v336
        %v1020 = vunpack.c.h.b16 %v336
        %v1021 = vunpack.c.l.b16 %v337
        %v1022 = vunpack.c.h.b16 %v337
        %v1023 = vunpack.c.l.b16 %v338
        %v1024 = vunpack.c.h.b16 %v338
        %v1025 = vunpack.c.l.b16 %v339
        %v1026 = vunpack.c.h.b16 %v339
        %v1027 = vunpack.c.l.b16 %v340
        %v1028 = vunpack.c.h.b16 %v340
        %v1029 = vunpack.c.l.b16 %v341
        %v1030 = vunpack.c.h.b16 %v341
        %v1031 = vunpack.c.l.b16 %v342
        %v1032 = vunpack.c.h.b16 %v342
        %v1033 = vunpack.c.l.b16 %v343
        %v1034 = vunpack.c.h.b16 %v343
        %v1035 = vunpack.c.l.b16 %v344
        %v1036 = vunpack.c.h.b16 %v344
        %v1037 = vunpack.c.l.b16 %v345
        %v1038 = vunpack.c.h.b16 %v345
        %v1039 = vunpack.c.l.b16 %v346
        %v1040 = vunpack.c.h.b16 %v346
        %v1041 = vunpack.c.l.b16 %v347
        %v1042 = vunpack.c.h.b16 %v347
        %v1043 = vunpack.c.l.b16 %v348
        %v1044 = vunpack.c.h.b16 %v348
        %v1045 = vunpack.c.l.b16 %v349
        %v1046 = vunpack.c.h.b16 %v349
        %v1047 = vunpack.c.l.b16 %v350
        %v1048 = vunpack.c.h.b16 %v350
        %v1049 = vunpack.c.l.b16 %v351
        %v1050 = vunpack.c.h.b16 %v351
        %v1051 = vunpack.c.l.b16 %v352
        %v1052 = vunpack.c.h.b16 %v352
        %v1053 = vunpack.c.l.b16 %v353
        %v1054 = vunpack.c.h.b16 %v353
        %v1055 = vunpack.c.l.b16 %v354
        %v1056 = vunpack.c.h.b16 %v354
        %v1057 = vunpack.c.l.b16 %v355
        %v1058 = vunpack.c.h.b16 %v355
        %v1059 = vunpack.c.l.b16 %v356
        %v1060 = vunpack.c.h.b16 %v356
        %v1061 = vunpack.c.l.b16 %v357
        %v1062 = vunpack.c.h.b16 %v357
        %v1063 = vunpack.c.l.b16 %v358
        %v1064 = vunpack.c.h.b16 %v358
        %v1065 = vunpack.c.l.b16 %v359
        %v1066 = vunpack.c.h.b16 %v359
        %v1067 = vunpack.c.l.b16 %v360
        %v1068 = vunpack.c.h.b16 %v360
        %v1069 = vunpack.c.l.b16 %v361
        %v1070 = vunpack.c.h.b16 %v361
        %v1071 = vunpack.c.l.b16 %v362
        %v1072 = vunpack.c.h.b16 %v362
        %v1073 = vunpack.c.l.b16 %v363
        %v1074 = vunpack.c.h.b16 %v363
        %v1075 = vunpack.c.l.b16 %v364
        %v1076 = vunpack.c.h.b16 %v364
        %v1077 = vunpack.c.l.b16 %v365
        %v1078 = vunpack.c.h.b16 %v365
        %v1079 = vunpack.c.l.b16 %v366
        %v1080 = vunpack.c.h.b16 %v366
        %v1081 = vunpack.c.l.b16 %v367
        %v1082 = vunpack.c.h.b16 %v367
        %v1083 = vunpack.c.l.b16 %v368
        %v1084 = vunpack.c.h.b16 %v368
        %v1085 = vunpack.c.l.b16 %v369
        %v1086 = vunpack.c.h.b16 %v369
        %v1087 = vunpack.c.l.b16 %v370
        %v1088 = vunpack.c.h.b16 %v370
        %v1089 = vunpack.c.l.b16 %v371
        %v1090 = vunpack.c.h.b16 %v371
        %v1091 = vunpack.c.l.b16 %v372
        %v1092 = vunpack.c.h.b16 %v372
        %v1093 = vunpack.c.l.b16 %v373
        %v1094 = vunpack.c.h.b16 %v373
        %v1095 = vunpack.c.l.b16 %v374
        %v1096 = vunpack.c.h.b16 %v374
        %v1097 = vunpack.c.l.b16 %v375
        %v1098 = vunpack.c.h.b16 %v375
        %v1099 = vunpack.c.l.b16 %v376
        %v1100 = vunpack.c.h.b16 %v376
        %v1101 = vunpack.c.l.b16 %v377
        %v1102 = vunpack.c.h.b16 %v377
        %v1103 = vunpack.c.l.b16 %v378
        %v1104 = vunpack.c.h.b16 %v378
        %v1105 = vunpack.c.l.b16 %v379
        %v1106 = vunpack.c.h.b16 %v379
        %v1107 = vunpack.c.l.b16 %v380
        %v1108 = vunpack.c.h.b16 %v380
        %v1109 = vunpack.c.l.b16 %v381
        %v1110 = vunpack.c.h.b16 %v381
        %v1111 = vunpack.c.l.b16 %v382
        %v1112 = vunpack.c.h.b16 %v382
        %v1113 = vunpack.c.l.b16 %v383
        %v1114 = vunpack.c.h.b16 %v383
        %v1115 = vunpack.c.l.b16 %v384
        %v1116 = vunpack.c.h.b16 %v384
        %v1117 = vunpack.c.l.b16 %v385
        %v1118 = vunpack.c.h.b16 %v385
        %v1119 = vunpack.c.l.b16 %v386
        %v1120 = vunpack.c.h.b16 %v386
        %v1121 = vunpack.c.l.b16 %v387
        %v1122 = vunpack.c.h.b16 %v387
        %v1123 = vunpack.c.l.b16 %v388
        %v1124 = vunpack.c.h.b16 %v388
        %v1125 = vunpack.c.l.b16 %v389
        %v1126 = vunpack.c.h.b16 %v389
        %v1127 = vunpack.c.l.b16 %v390
        %v1128 = vunpack.c.h.b16 %v390
        %v1129 = vunpack.c.l.b16 %v391
        %v1130 = vunpack.c.h.b16 %v391
        %v1131 = vunpack.c.l.b16 %v392
        %v1132 = vunpack.c.h.b16 %v392
        %v1133 = vunpack.c.l.b16 %v393
        %v1134 = vunpack.c.h.b16 %v393
        %v1135 = vunpack.c.l.b16 %v394
        %v1136 = vunpack.c.h.b16 %v394
        %v1137 = vunpack.c.l.b16 %v395
        %v1138 = vunpack.c.h.b16 %v395
        %v1139 = vunpack.c.l.b16 %v396
        %v1140 = vunpack.c.h.b16 %v396
        %v1141 = vunpack.c.l.b16 %v397
        %v1142 = vunpack.c.h.b16 %v397
        %v1143 = vunpack.c.l.b16 %v398
        %v1144 = vunpack.c.h.b16 %v398
        %v1145 = vunpack.c.l.b16 %v399
        %v1146 = vunpack.c.h.b16 %v399
        %v1147 = vunpack.c.l.b16 %v400
        %v1148 = vunpack.c.h.b16 %v400
        %v1149 = vunpack.c.l.b16 %v401
        %v1150 = vunpack.c.h.b16 %v401
        %v1151 = vunpack.c.l.b16 %v402
        %v1152 = vunpack.c.h.b16 %v402
        %v1153 = vunpack.c.l.b16 %v403
        %v1154 = vunpack.c.h.b16 %v403
        %v1155 = vunpack.c.l.b16 %v404
        %v1156 = vunpack.c.h.b16 %v404
        %v1157 = vunpack.c.l.b16 %v405
        %v1158 = vunpack.c.h.b16 %v405
        %v1159 = vunpack.c.l.b16 %v406
        %v1160 = vunpack.c.h.b16 %v406
        %v1161 = vunpack.c.l.b16 %v407
        %v1162 = vunpack.c.h.b16 %v407
        %v1163 = vunpack.c.l.b16 %v408
        %v1164 = vunpack.c.h.b16 %v408
        %v1165 = vunpack.c.l.b16 %v409
        %v1166 = vunpack.c.h.b16 %v409
        %v1167 = vunpack.c.l.b16 %v410
        %v1168 = vunpack.c.h.b16 %v410
        %v1169 = vunpack.c.l.b16 %v411
        %v1170 = vunpack.c.h.b16 %v411
        %v1171 = vunpack.c.l.b16 %v412
        %v1172 = vunpack.c.h.b16 %v412
        %v1173 = vunpack.c.l.b16 %v413
        %v1174 = vunpack.c.h.b16 %v413
        %v1175 = vunpack.c.l.b16 %v414
        %v1176 = vunpack.c.h.b16 %v414
        %v1177 = vunpack.c.l.b16 %v415
        %v1178 = vunpack.c.h.b16 %v415
        %v1179 = vunpack.c.l.b16 %v416
        %v1180 = vunpack.c.h.b16 %v416
        %v1181 = vunpack.c.l.b16 %v417
        %v1182 = vunpack.c.h.b16 %v417
        %v1183 = vunpack.c.l.b16 %v418
        %v1184 = vunpack.c.h.b16 %v418
        %v1185 = vunpack.c.l.b16 %v419
        %v1186 = vunpack.c.h.b16 %v419
        %v1187 = vunpack.c.l.b16 %v420
        %v1188 = vunpack.c.h.b16 %v420
        %v1189 = vunpack.c.l.b16 %v421
        %v1190 = vunpack.c.h.b16 %v421
        %v1191 = vunpack.c.l.b16 %v422
        %v1192 = vunpack.c.h.b16 %v422
        %v1193 = vunpack.c.l.b16 %v423
        %v1194 = vunpack.c.h.b16 %v423
        %v1195 = vunpack.c.l.b16 %v424
        %v1196 = vunpack.c.h.b16 %v424
        %v1197 = vunpack.c.l.b16 %v425
        %v1198 = vunpack.c.h.b16 %v425
        %v1199 = vunpack.c.l.b16 %v426
        %v1200 = vunpack.c.h.b16 %v426
        %v1201 = vunpack.c.l.b16 %v427
        %v1202 = vunpack.c.h.b16 %v427
        %v1203 = vunpack.c.l.b16 %v428
        %v1204 = vunpack.c.h.b16 %v428
        %v1205 = vunpack.c.l.b16 %v429
        %v1206 = vunpack.c.h.b16 %v429
        %v1207 = vunpack.c.l.b16 %v430
        %v1208 = vunpack.c.h.b16 %v430
        %v1209 = vunpack.c.l.b16 %v431
        %v1210 = vunpack.c.h.b16 %v431
        %v1211 = vunpack.c.l.b16 %v432
        %v1212 = vunpack.c.h.b16 %v432
        %v1213 = vunpack.c.l.b16 %v433
        %v1214 = vunpack.c.h.b16 %v433
        %v1215 = vunpack.c.l.b16 %v434
        %v1216 = vunpack.c.h.b16 %v434
        %v1217 = vunpack.c.l.b16 %v435
        %v1218 = vunpack.c.h.b16 %v435
        %v1219 = vunpack.c.l.b16 %v436
        %v1220 = vunpack.c.h.b16 %v436
        %v1221 = vunpack.c.l.b16 %v437
        %v1222 = vunpack.c.h.b16 %v437
        %v1223 = vunpack.c.l.b16 %v438
        %v1224 = vunpack.c.h.b16 %v438
        %v1225 = vunpack.c.l.b16 %v439
        %v1226 = vunpack.c.h.b16 %v439
        %v1227 = vunpack.c.l.b16 %v440
        %v1228 = vunpack.c.h.b16 %v440
        %v1229 = vunpack.c.l.b16 %v441
        %v1230 = vunpack.c.h.b16 %v441
        %v1231 = vunpack.c.l.b16 %v442
        %v1232 = vunpack.c.h.b16 %v442
        %v1233 = vunpack.c.l.b16 %v443
        %v1234 = vunpack.c.h.b16 %v443
        %v1235 = vunpack.c.l.b16 %v444
        %v1236 = vunpack.c.h.b16 %v444
        %v1237 = vunpack.c.l.b16 %v445
        %v1238 = vunpack.c.h.b16 %v445
        %v1239 = vunpack.c.l.b16 %v446
        %v1240 = vunpack.c.h.b16 %v446
        %v1241 = vunpack.c.l.b16 %v447
        %v1242 = vunpack.c.h.b16 %v447
        %v1243 = vunpack.c.l.b16 %v448
        %v1244 = vunpack.c.h.b16 %v448
        %v1245 = vunpack.c.l.b16 %v449
        %v1246 = vunpack.c.h.b16 %v449
        %v1247 = vunpack.c.l.b16 %v450
        %v1248 = vunpack.c.h.b16 %v450
        %v1249 = vunpack.c.l.b16 %v451
        %v1250 = vunpack.c.h.b16 %v451
        %v1251 = vunpack.c.l.b16 %v452
        %v1252 = vunpack.c.h.b16 %v452
        %v1253 = vunpack.c.l.b16 %v453
        %v1254 = vunpack.c.h.b16 %v453
        %v1255 = vunpack.c.l.b16 %v454
        %v1256 = vunpack.c.h.b16 %v454
        %v1257 = vunpack.c.l.b16 %v455
        %v1258 = vunpack.c.h.b16 %v455
        %v1259 = vunpack.c.l.b16 %v456
        %v1260 = vunpack.c.h.b16 %v456
        %v1261 = vunpack.c.l.b16 %v457
        %v1262 = vunpack.c.h.b16 %v457
        %v1263 = vunpack.c.l.b16 %v458
        %v1264 = vunpack.c.h.b16 %v458
        %v1265 = vunpack.c.l.b16 %v459
        %v1266 = vunpack.c.h.b16 %v459
        %v1267 = vunpack.c.l.b16 %v460
        %v1268 = vunpack.c.h.b16 %v460
        %v1269 = vunpack.c.l.b16 %v461
        %v1270 = vunpack.c.h.b16 %v461
        %v1271 = vunpack.c.l.b16 %v462
        %v1272 = vunpack.c.h.b16 %v462
        %v1273 = vunpack.c.l.b16 %v463
        %v1274 = vunpack.c.h.b16 %v463
        %v1275 = vunpack.c.l.b16 %v464
        %v1276 = vunpack.c.h.b16 %v464
        %v1277 = vunpack.c.l.b16 %v465
        %v1278 = vunpack.c.h.b16 %v465
        %v1279 = vunpack.c.l.b16 %v466
        %v1280 = vunpack.c.h.b16 %v466
        %v1281 = vunpack.c.l.b16 %v467
        %v1282 = vunpack.c.h.b16 %v467
        %v1283 = vunpack.c.l.b16 %v468
        %v1284 = vunpack.c.h.b16 %v468
        %v1285 = vunpack.c.l.b16 %v469
        %v1286 = vunpack.c.h.b16 %v469
        %v1287 = vunpack.c.l.b16 %v470
        %v1288 = vunpack.c.h.b16 %v470
        %v1289 = vunpack.c.l.b16 %v471
        %v1290 = vunpack.c.h.b16 %v471
        %v1291 = vunpack.c.l.b16 %v472
        %v1292 = vunpack.c.h.b16 %v472
        %v1293 = vunpack.c.l.b16 %v473
        %v1294 = vunpack.c.h.b16 %v473
        %v1295 = vunpack.c.l.b16 %v474
        %v1296 = vunpack.c.h.b16 %v474
        %v1297 = vunpack.c.l.b16 %v475
        %v1298 = vunpack.c.h.b16 %v475
        %v1299 = vunpack.c.l.b16 %v476
        %v1300 = vunpack.c.h.b16 %v476
        %v1301 = vunpack.c.l.b16 %v477
        %v1302 = vunpack.c.h.b16 %v477
        %v1303 = vunpack.c.l.b16 %v478
        %v1304 = vunpack.c.h.b16 %v478
        %v1305 = vunpack.c.l.b16 %v479
        %v1306 = vunpack.c.h.b16 %v479
        %v1307 = vunpack.c.l.b16 %v480
        %v1308 = vunpack.c.h.b16 %v480
        %v1309 = vunpack.c.l.b16 %v481
        %v1310 = vunpack.c.h.b16 %v481
        %v1311 = vunpack.c.l.b16 %v482
        %v1312 = vunpack.c.h.b16 %v482
        %v1313 = vunpack.c.l.b16 %v483
        %v1314 = vunpack.c.h.b16 %v483
        %v1315 = vunpack.c.l.b16 %v484
        %v1316 = vunpack.c.h.b16 %v484
        %v1317 = vunpack.c.l.b16 %v485
        %v1318 = vunpack.c.h.b16 %v485
        %v1319 = vunpack.c.l.b16 %v486
        %v1320 = vunpack.c.h.b16 %v486
        %v1321 = vunpack.c.l.b16 %v487
        %v1322 = vunpack.c.h.b16 %v487
        %v1323 = vunpack.c.l.b16 %v488
        %v1324 = vunpack.c.h.b16 %v488
        %v1325 = vunpack.c.l.b16 %v489
        %v1326 = vunpack.c.h.b16 %v489
        %v1327 = vunpack.c.l.b16 %v490
        %v1328 = vunpack.c.h.b16 %v490
        %v1329 = vunpack.c.l.b16 %v491
        %v1330 = vunpack.c.h.b16 %v491
        %v1331 = vunpack.c.l.b16 %v492
        %v1332 = vunpack.c.h.b16 %v492
        %v1333 = vunpack.c.l.b16 %v493
        %v1334 = vunpack.c.h.b16 %v493
        %v1335 = vunpack.c.l.b16 %v494
        %v1336 = vunpack.c.h.b16 %v494
        %v1337 = vunpack.c.l.b16 %v495
        %v1338 = vunpack.c.h.b16 %v495
        %v1339 = vunpack.c.l.b16 %v496
        %v1340 = vunpack.c.h.b16 %v496
        %v1341 = vunpack.c.l.b16 %v497
        %v1342 = vunpack.c.h.b16 %v497
        %v1343 = vunpack.c.l.b16 %v498
        %v1344 = vunpack.c.h.b16 %v498
        %v1345 = vunpack.c.l.b16 %v499
        %v1346 = vunpack.c.h.b16 %v499
        %v1347 = vunpack.c.l.b16 %v500
        %v1348 = vunpack.c.h.b16 %v500
        %v1349 = vunpack.c.l.b16 %v501
        %v1350 = vunpack.c.h.b16 %v501
        %v1351 = vunpack.c.l.b16 %v502
        %v1352 = vunpack.c.h.b16 %v502
        %v1353 = vunpack.c.l.b16 %v503
        %v1354 = vunpack.c.h.b16 %v503
        %v1355 = vunpack.c.l.b16 %v504
        %v1356 = vunpack.c.h.b16 %v504
        %v1357 = vunpack.c.l.b16 %v505
        %v1358 = vunpack.c.h.b16 %v505
        %v1359 = vunpack.c.l.b16 %v506
        %v1360 = vunpack.c.h.b16 %v506
        %v1361 = vunpack.c.l.b16 %v507
        %v1362 = vunpack.c.h.b16 %v507
        %v1363 = vunpack.c.l.b16 %v508
        %v1364 = vunpack.c.h.b16 %v508
        %v1365 = vunpack.c.l.b16 %v509
        %v1366 = vunpack.c.h.b16 %v509
        %v1367 = vunpack.c.l.b16 %v510
        %v1368 = vunpack.c.h.b16 %v510
        %v1369 = vunpack.c.l.b16 %v511
        %v1370 = vunpack.c.h.b16 %v511
        %v1371 = vunpack.c.l.b16 %v512
        %v1372 = vunpack.c.h.b16 %v512
        %v1373 = vunpack.c.l.b16 %v513
        %v1374 = vunpack.c.h.b16 %v513
        %v1375 = vunpack.c.l.b16 %v514
        %v1376 = vunpack.c.h.b16 %v514
        %v1377 = vunpack.c.l.b16 %v515
        %v1378 = vunpack.c.h.b16 %v515
        %v1379 = vunpack.c.l.b16 %v516
        %v1380 = vunpack.c.h.b16 %v516
        %v1381 = vunpack.c.l.b16 %v517
        %v1382 = vunpack.c.h.b16 %v517
        %v1383 = vunpack.c.l.b16 %v518
        %v1384 = vunpack.c.h.b16 %v518
        %v1385 = vunpack.c.l.b16 %v519
        %v1386 = vunpack.c.h.b16 %v519
        %v1387 = vunpack.c.l.b16 %v520
        %v1388 = vunpack.c.h.b16 %v520
        %v1389 = vunpack.c.l.b16 %v521
        %v1390 = vunpack.c.h.b16 %v521
        %v1391 = vunpack.c.l.b16 %v522
        %v1392 = vunpack.c.h.b16 %v522
        %v1393 = vunpack.c.l.b16 %v523
        %v1394 = vunpack.c.h.b16 %v523
        %v1395 = vunpack.c.l.b16 %v524
        %v1396 = vunpack.c.h.b16 %v524
        %v1397 = vunpack.c.l.b16 %v525
        %v1398 = vunpack.c.h.b16 %v525
        %v1399 = vunpack.c.l.b16 %v526
        %v1400 = vunpack.c.h.b16 %v526
        %v1401 = vunpack.c.l.b16 %v527
        %v1402 = vunpack.c.h.b16 %v527
        %v1403 = vunpack.c.l.b16 %v528
        %v1404 = vunpack.c.h.b16 %v528
        %v1405 = vunpack.c.l.b16 %v529
        %v1406 = vunpack.c.h.b16 %v529
        %v1407 = vunpack.c.l.b16 %v530
        %v1408 = vunpack.c.h.b16 %v530
        %v1409 = vunpack.c.l.b16 %v531
        %v1410 = vunpack.c.h.b16 %v531
        %v1411 = vunpack.c.l.b16 %v532
        %v1412 = vunpack.c.h.b16 %v532
        %v1413 = vunpack.c.l.b16 %v533
        %v1414 = vunpack.c.h.b16 %v533
        %v1415 = vunpack.c.l.b16 %v534
        %v1416 = vunpack.c.h.b16 %v534
        %v1417 = vunpack.c.l.b16 %v535
        %v1418 = vunpack.c.h.b16 %v535
        %v1419 = vunpack.c.l.b16 %v536
        %v1420 = vunpack.c.h.b16 %v536
        %v1421 = vunpack.c.l.b16 %v537
        %v1422 = vunpack.c.h.b16 %v537
        %v1423 = vunpack.c.l.b16 %v538
        %v1424 = vunpack.c.h.b16 %v538
        %v1425 = vunpack.c.l.b16 %v539
        %v1426 = vunpack.c.h.b16 %v539
        %v1427 = vunpack.c.l.b16 %v540
        %v1428 = vunpack.c.h.b16 %v540
        %v1429 = vunpack.c.l.b16 %v541
        %v1430 = vunpack.c.h.b16 %v541
        %v1431 = vunpack.c.l.b16 %v542
        %v1432 = vunpack.c.h.b16 %v542
        %v1433 = vunpack.c.l.b16 %v543
        %v1434 = vunpack.c.h.b16 %v543
        %v1435 = vunpack.c.l.b16 %v544
        %v1436 = vunpack.c.h.b16 %v544
        %v1437 = vunpack.c.l.b16 %v545
        %v1438 = vunpack.c.h.b16 %v545
        %v1439 = vunpack.c.l.b16 %v546
        %v1440 = vunpack.c.h.b16 %v546
        %v1441 = vunpack.c.l.b16 %v547
        %v1442 = vunpack.c.h.b16 %v547
        %v1443 = vunpack.c.l.b16 %v548
        %v1444 = vunpack.c.h.b16 %v548
        %v1445 = vunpack.c.l.b16 %v549
        %v1446 = vunpack.c.h.b16 %v549
        %v1447 = vunpack.c.l.b16 %v550
        %v1448 = vunpack.c.h.b16 %v550
        %v1449 = vunpack.c.l.b16 %v551
        %v1450 = vunpack.c.h.b16 %v551
        %v1451 = vunpack.c.l.b16 %v552
        %v1452 = vunpack.c.h.b16 %v552
        %v1453 = vunpack.c.l.b16 %v553
        %v1454 = vunpack.c.h.b16 %v553
        %v1455 = vunpack.c.l.b16 %v554
        %v1456 = vunpack.c.h.b16 %v554
        %v1457 = vunpack.c.l.b16 %v555
        %v1458 = vunpack.c.h.b16 %v555
        %v1459 = vunpack.c.l.b16 %v556
        %v1460 = vunpack.c.h.b16 %v556
        %v1461 = vunpack.c.l.b16 %v557
        %v1462 = vunpack.c.h.b16 %v557
        %v1463 = vunpack.c.l.b16 %v558
        %v1464 = vunpack.c.h.b16 %v558
        %v1465 = vunpack.c.l.b16 %v559
        %v1466 = vunpack.c.h.b16 %v559
        %v1467 = vunpack.c.l.b16 %v560
        %v1468 = vunpack.c.h.b16 %v560
        %v1469 = vunpack.c.l.b16 %v561
        %v1470 = vunpack.c.h.b16 %v561
        %v1471 = vunpack.c.l.b16 %v562
        %v1472 = vunpack.c.h.b16 %v562
        %v1473 = vunpack.c.l.b16 %v563
        %v1474 = vunpack.c.h.b16 %v563
        %v1475 = vunpack.c.l.b16 %v564
        %v1476 = vunpack.c.h.b16 %v564
        %v1477 = vunpack.c.l.b16 %v565
        %v1478 = vunpack.c.h.b16 %v565
        %v1479 = vunpack.c.l.b16 %v566
        %v1480 = vunpack.c.h.b16 %v566
        %v1481 = vunpack.c.l.b16 %v567
        %v1482 = vunpack.c.h.b16 %v567
        %v1483 = vunpack.c.l.b16 %v568
        %v1484 = vunpack.c.h.b16 %v568
        %v1485 = vunpack.c.l.b16 %v569
        %v1486 = vunpack.c.h.b16 %v569
        %v1487 = vpack.c.b16 %v917, %v911
        %v1488 = vpack.c.b16 %v918, %v912
        %v1489 = vpack.c.b16 %v919, %v913
        %v1490 = vpack.c.b16 %v920, %v914
        %v1491 = vpack.c.b16 %v921, %v915
        %v1492 = vpack.c.b16 %v922, %v916
        %v1493 = vpack.c.b16 %v929, %v923
        %v1494 = vpack.c.b16 %v930, %v924
        %v1495 = vpack.c.b16 %v931, %v925
        %v1496 = vpack.c.b16 %v932, %v926
        %v1497 = vpack.c.b16 %v933, %v927
        %v1498 = vpack.c.b16 %v934, %v928
        %v1499 = vpack.c.b16 %v941, %v935
        %v1500 = vpack.c.b16 %v942, %v936
        %v1501 = vpack.c.b16 %v943, %v937
        %v1502 = vpack.c.b16 %v944, %v938
        %v1503 = vpack.c.b16 %v945, %v939
        %v1504 = vpack.c.b16 %v946, %v940
        %v1505 = vpack.c.b16 %v953, %v947
        %v1506 = vpack.c.b16 %v954, %v948
        %v1507 = vpack.c.b16 %v955, %v949
        %v1508 = vpack.c.b16 %v956, %v950
        %v1509 = vpack.c.b16 %v957, %v951
        %v1510 = vpack.c.b16 %v958, %v952
        %v1511 = vpack.c.b16 %v965, %v959
        %v1512 = vpack.c.b16 %v966, %v960
        %v1513 = vpack.c.b16 %v967, %v961
        %v1514 = vpack.c.b16 %v968, %v962
        %v1515 = vpack.c.b16 %v969, %v963
        %v1516 = vpack.c.b16 %v970, %v964
        %v1517 = vpack.c.b16 %v977, %v971
        %v1518 = vpack.c.b16 %v978, %v972
        %v1519 = vpack.c.b16 %v979, %v973
        %v1520 = vpack.c.b16 %v980, %v974
        %v1521 = vpack.c.b16 %v981, %v975
        %v1522 = vpack.c.b16 %v982, %v976
        %v1523 = vpack.c.b16 %v989, %v983
        %v1524 = vpack.c.b16 %v990, %v984
        %v1525 = vpack.c.b16 %v991, %v985
        %v1526 = vpack.c.b16 %v992, %v986
        %v1527 = vpack.c.b16 %v993, %v987
        %v1528 = vpack.c.b16 %v994, %v988
        %v1529 = vpack.c.b16 %v1001, %v995
        %v1530 = vpack.c.b16 %v1002, %v996
        %v1531 = vpack.c.b16 %v1003, %v997
        %v1532 = vpack.c.b16 %v1004, %v998
        %v1533 = vpack.c.b16 %v1005, %v999
        %v1534 = vpack.c.b16 %v1006, %v1000
        %v1535 = vpack.c.b16 %v1013, %v1007
        %v1536 = vpack.c.b16 %v1014, %v1008
        %v1537 = vpack.c.b16 %v1015, %v1009
        %v1538 = vpack.c.b16 %v1016, %v1010
        %v1539 = vpack.c.b16 %v1017, %v1011
        %v1540 = vpack.c.b16 %v1018, %v1012
        %v1541 = vpack.c.b16 %v1025, %v1019
        %v1542 = vpack.c.b16 %v1026, %v1020
        %v1543 = vpack.c.b16 %v1027, %v1021
        %v1544 = vpack.c.b16 %v1028, %v1022
        %v1545 = vpack.c.b16 %v1029, %v1023
        %v1546 = vpack.c.b16 %v1030, %v1024
        %v1547 = vpack.c.b16 %v1037, %v1031
        %v1548 = vpack.c.b16 %v1038, %v1032
        %v1549 = vpack.c.b16 %v1039, %v1033
        %v1550 = vpack.c.b16 %v1040, %v1034
        %v1551 = vpack.c.b16 %v1041, %v1035
        %v1552 = vpack.c.b16 %v1042, %v1036
        %v1553 = vpack.c.b16 %v1049, %v1043
        %v1554 = vpack.c.b16 %v1050, %v1044
        %v1555 = vpack.c.b16 %v1051, %v1045
        %v1556 = vpack.c.b16 %v1052, %v1046
        %v1557 = vpack.c.b16 %v1053, %v1047
        %v1558 = vpack.c.b16 %v1054, %v1048
        %v1559 = vpack.c.b16 %v1061, %v1055
        %v1560 = vpack.c.b16 %v1062, %v1056
        %v1561 = vpack.c.b16 %v1063, %v1057
        %v1562 = vpack.c.b16 %v1064, %v1058
        %v1563 = vpack.c.b16 %v1065, %v1059
        %v1564 = vpack.c.b16 %v1066, %v1060
        %v1565 = vpack.c.b16 %v1073, %v1067
        %v1566 = vpack.c.b16 %v1074, %v1068
        %v1567 = vpack.c.b16 %v1075, %v1069
        %v1568 = vpack.c.b16 %v1076, %v1070
        %v1569 = vpack.c.b16 %v1077, %v1071
        %v1570 = vpack.c.b16 %v1078, %v1072
        %v1571 = vpack.c.b16 %v1085, %v1079
        %v1572 = vpack.c.b16 %v1086, %v1080
        %v1573 = vpack.c.b16 %v1087, %v1081
        %v1574 = vpack.c.b16 %v1088, %v1082
        %v1575 = vpack.c.b16 %v1089, %v1083
        %v1576 = vpack.c.b16 %v1090, %v1084
        %v1577 = vpack.c.b16 %v1097, %v1091
        %v1578 = vpack.c.b16 %v1098, %v1092
        %v1579 = vpack.c.b16 %v1099, %v1093
        %v1580 = vpack.c.b16 %v1100, %v1094
        %v1581 = vpack.c.b16 %v1101, %v1095
        %v1582 = vpack.c.b16 %v1102, %v1096
        %v1583 = vpack.c.b16 %v1109, %v1103
        %v1584 = vpack.c.b16 %v1110, %v1104
        %v1585 = vpack.c.b16 %v1111, %v1105
        %v1586 = vpack.c.b16 %v1112, %v1106
        %v1587 = vpack.c.b16 %v1113, %v1107
        %v1588 = vpack.c.b16 %v1114, %v1108
        %v1589 = vpack.c.b16 %v1121, %v1115
        %v1590 = vpack.c.b16 %v1122, %v1116
        %v1591 = vpack.c.b16 %v1123, %v1117
        %v1592 = vpack.c.b16 %v1124, %v1118
        %v1593 = vpack.c.b16 %v1125, %v1119
        %v1594 = vpack.c.b16 %v1126, %v1120
        %v1595 = vpack.c.b16 %v1133, %v1127
        %v1596 = vpack.c.b16 %v1134, %v1128
        %v1597 = vpack.c.b16 %v1135, %v1129
        %v1598 = vpack.c.b16 %v1136, %v1130
        %v1599 = vpack.c.b16 %v1137, %v1131
        %v1600 = vpack.c.b16 %v1138, %v1132
        %v1601 = vpack.c.b16 %v1145, %v1139
        %v1602 = vpack.c.b16 %v1146, %v1140
        %v1603 = vpack.c.b16 %v1147, %v1141
        %v1604 = vpack.c.b16 %v1148, %v1142
        %v1605 = vpack.c.b16 %v1149, %v1143
        %v1606 = vpack.c.b16 %v1150, %v1144
        %v1607 = vpack.c.b16 %v1157, %v1151
        %v1608 = vpack.c.b16 %v1158, %v1152
        %v1609 = vpack.c.b16 %v1159, %v1153
        %v1610 = vpack.c.b16 %v1160, %v1154
        %v1611 = vpack.c.b16 %v1161, %v1155
        %v1612 = vpack.c.b16 %v1162, %v1156
        %v1613 = vpack.c.b16 %v1169, %v1163
        %v1614 = vpack.c.b16 %v1170, %v1164
        %v1615 = vpack.c.b16 %v1171, %v1165
        %v1616 = vpack.c.b16 %v1172, %v1166
        %v1617 = vpack.c.b16 %v1173, %v1167
        %v1618 = vpack.c.b16 %v1174, %v1168
        %v1619 = vpack.c.b16 %v1181, %v1175
        %v1620 = vpack.c.b16 %v1182, %v1176
        %v1621 = vpack.c.b16 %v1183, %v1177
        %v1622 = vpack.c.b16 %v1184, %v1178
        %v1623 = vpack.c.b16 %v1185, %v1179
        %v1624 = vpack.c.b16 %v1186, %v1180
        %v1625 = vpack.c.b16 %v1193, %v1187
        %v1626 = vpack.c.b16 %v1194, %v1188
        %v1627 = vpack.c.b16 %v1195, %v1189
        %v1628 = vpack.c.b16 %v1196, %v1190
        %v1629 = vpack.c.b16 %v1197, %v1191
        %v1630 = vpack.c.b16 %v1198, %v1192
        %v1631 = vpack.c.b16 %v1205, %v1199
        %v1632 = vpack.c.b16 %v1206, %v1200
        %v1633 = vpack.c.b16 %v1207, %v1201
        %v1634 = vpack.c.b16 %v1208, %v1202
        %v1635 = vpack.c.b16 %v1209, %v1203
        %v1636 = vpack.c.b16 %v1210, %v1204
        %v1637 = vpack.c.b16 %v1217, %v1211
        %v1638 = vpack.c.b16 %v1218, %v1212
        %v1639 = vpack.c.b16 %v1219, %v1213
        %v1640 = vpack.c.b16 %v1220, %v1214
        %v1641 = vpack.c.b16 %v1221, %v1215
        %v1642 = vpack.c.b16 %v1222, %v1216
        %v1643 = vpack.c.b16 %v1229, %v1223
        %v1644 = vpack.c.b16 %v1230, %v1224
        %v1645 = vpack.c.b16 %v1231, %v1225
        %v1646 = vpack.c.b16 %v1232, %v1226
        %v1647 = vpack.c.b16 %v1233, %v1227
        %v1648 = vpack.c.b16 %v1234, %v1228
        %v1649 = vpack.c.b16 %v1241, %v1235
        %v1650 = vpack.c.b16 %v1242, %v1236
        %v1651 = vpack.c.b16 %v1243, %v1237
        %v1652 = vpack.c.b16 %v1244, %v1238
        %v1653 = vpack.c.b16 %v1245, %v1239
        %v1654 = vpack.c.b16 %v1246, %v1240
        %v1655 = vpack.c.b16 %v1253, %v1247
        %v1656 = vpack.c.b16 %v1254, %v1248
        %v1657 = vpack.c.b16 %v1255, %v1249
        %v1658 = vpack.c.b16 %v1256, %v1250
        %v1659 = vpack.c.b16 %v1257, %v1251
        %v1660 = vpack.c.b16 %v1258, %v1252
        %v1661 = vpack.c.b16 %v1265, %v1259
        %v1662 = vpack.c.b16 %v1266, %v1260
        %v1663 = vpack.c.b16 %v1267, %v1261
        %v1664 = vpack.c.b16 %v1268, %v1262
        %v1665 = vpack.c.b16 %v1269, %v1263
        %v1666 = vpack.c.b16 %v1270, %v1264
        %v1667 = vpack.c.b16 %v1277, %v1271
        %v1668 = vpack.c.b16 %v1278, %v1272
        %v1669 = vpack.c.b16 %v1279, %v1273
        %v1670 = vpack.c.b16 %v1280, %v1274
        %v1671 = vpack.c.b16 %v1281, %v1275
        %v1672 = vpack.c.b16 %v1282, %v1276
        %v1673 = vpack.c.b16 %v1289, %v1283
        %v1674 = vpack.c.b16 %v1290, %v1284
        %v1675 = vpack.c.b16 %v1291, %v1285
        %v1676 = vpack.c.b16 %v1292, %v1286
        %v1677 = vpack.c.b16 %v1293, %v1287
        %v1678 = vpack.c.b16 %v1294, %v1288
        %v1679 = vpack.c.b16 %v1301, %v1295
        %v1680 = vpack.c.b16 %v1302, %v1296
        %v1681 = vpack.c.b16 %v1303, %v1297
        %v1682 = vpack.c.b16 %v1304, %v1298
        %v1683 = vpack.c.b16 %v1305, %v1299
        %v1684 = vpack.c.b16 %v1306, %v1300
        %v1685 = vpack.c.b16 %v1313, %v1307
        %v1686 = vpack.c.b16 %v1314, %v1308
        %v1687 = vpack.c.b16 %v1315, %v1309
        %v1688 = vpack.c.b16 %v1316, %v1310
        %v1689 = vpack.c.b16 %v1317, %v1311
        %v1690 = vpack.c.b16 %v1318, %v1312
        %v1691 = vpack.c.b16 %v1325, %v1319
        %v1692 = vpack.c.b16 %v1326, %v1320
        %v1693 = vpack.c.b16 %v1327, %v1321
        %v1694 = vpack.c.b16 %v1328, %v1322
        %v1695 = vpack.c.b16 %v1329, %v1323
        %v1696 = vpack.c.b16 %v1330, %v1324
        %v1697 = vpack.c.b16 %v1337, %v1331
        %v1698 = vpack.c.b16 %v1338, %v1332
        %v1699 = vpack.c.b16 %v1339, %v1333
        %v1700 = vpack.c.b16 %v1340, %v1334
        %v1701 = vpack.c.b16 %v1341, %v1335
        %v1702 = vpack.c.b16 %v1342, %v1336
        %v1703 = vpack.c.b16 %v1349, %v1343
        %v1704 = vpack.c.b16 %v1350, %v1344
        %v1705 = vpack.c.b16 %v1351, %v1345
        %v1706 = vpack.c.b16 %v1352, %v1346
        %v1707 = vpack.c.b16 %v1353, %v1347
        %v1708 = vpack.c.b16 %v1354, %v1348
        %v1709 = vpack.c.b16 %v1361, %v1355
        %v1710 = vpack.c.b16 %v1362, %v1356
        %v1711 = vpack.c.b16 %v1363, %v1357
        %v1712 = vpack.c.b16 %v1364, %v1358
        %v1713 = vpack.c.b16 %v1365, %v1359
        %v1714 = vpack.c.b16 %v1366, %v1360
        %v1715 = vpack.c.b16 %v1373, %v1367
        %v1716 = vpack.c.b16 %v1374, %v1368
        %v1717 = vpack.c.b16 %v1375, %v1369
        %v1718 = vpack.c.b16 %v1376, %v1370
        %v1719 = vpack.c.b16 %v1377, %v1371
        %v1720 = vpack.c.b16 %v1378, %v1372
        %v1721 = vpack.c.b16 %v1385, %v1379
        %v1722 = vpack.c.b16 %v1386, %v1380
        %v1723 = vpack.c.b16 %v1387, %v1381
        %v1724 = vpack.c.b16 %v1388, %v1382
        %v1725 = vpack.c.b16 %v1389, %v1383
        %v1726 = vpack.c.b16 %v1390, %v1384
        %v1727 = vpack.c.b16 %v1397, %v1391
        %v1728 = vpack.c.b16 %v1398, %v1392
        %v1729 = vpack.c.b16 %v1399, %v1393
        %v1730 = vpack.c.b16 %v1400, %v1394
        %v1731 = vpack.c.b16 %v1401, %v1395
        %v1732 = vpack.c.b16 %v1402, %v1396
        %v1733 = vpack.c.b16 %v1409, %v1403
        %v1734 = vpack.c.b16 %v1410, %v1404
        %v1735 = vpack.c.b16 %v1411, %v1405
        %v1736 = vpack.c.b16 %v1412, %v1406
        %v1737 = vpack.c.b16 %v1413, %v1407
        %v1738 = vpack.c.b16 %v1414, %v1408
        %v1739 = vpack.c.b16 %v1421, %v1415
        %v1740 = vpack.c.b16 %v1422, %v1416
        %v1741 = vpack.c.b16 %v1423, %v1417
        %v1742 = vpack.c.b16 %v1424, %v1418
        %v1743 = vpack.c.b16 %v1425, %v1419
        %v1744 = vpack.c.b16 %v1426, %v1420
        %v1745 = vpack.c.b16 %v1433, %v1427
        %v1746 = vpack.c.b16 %v1434, %v1428
        %v1747 = vpack.c.b16 %v1435, %v1429
        %v1748 = vpack.c.b16 %v1436, %v1430
        %v1749 = vpack.c.b16 %v1437, %v1431
        %v1750 = vpack.c.b16 %v1438, %v1432
        %v1751 = vpack.c.b16 %v1445, %v1439
        %v1752 = vpack.c.b16 %v1446, %v1440
        %v1753 = vpack.c.b16 %v1447, %v1441
        %v1754 = vpack.c.b16 %v1448, %v1442
        %v1755 = vpack.c.b16 %v1449, %v1443
        %v1756 = vpack.c.b16 %v1450, %v1444
        %v1757 = vpack.c.b16 %v1457, %v1451
        %v1758 = vpack.c.b16 %v1458, %v1452
        %v1759 = vpack.c.b16 %v1459, %v1453
        %v1760 = vpack.c.b16 %v1460, %v1454
        %v1761 = vpack.c.b16 %v1461, %v1455
        %v1762 = vpack.c.b16 %v1462, %v1456
        %v1763 = vpack.c.b16 %v1469, %v1463
        %v1764 = vpack.c.b16 %v1470, %v1464
        %v1765 = vpack.c.b16 %v1471, %v1465
        %v1766 = vpack.c.b16 %v1472, %v1466
        %v1767 = vpack.c.b16 %v1473, %v1467
        %v1768 = vpack.c.b16 %v1474, %v1468
        %v1769 = vpack.c.b16 %v1481, %v1475
        %v1770 = vpack.c.b16 %v1482, %v1476
        %v1771 = vpack.c.b16 %v1483, %v1477
        %v1772 = vpack.c.b16 %v1484, %v1478
        %v1773 = vpack.c.b16 %v1485, %v1479
        %v1774 = vpack.c.b16 %v1486, %v1480
        %2063 = vmatprep.subr.bf16.mxu0 %v1530
        %2064 = vmatpush1.bf16.msra.mxu0 %v1529
        %2065 = vmatprep.subr.bf16.mxu0 %v1524
        %2066 = vmatpush1.bf16.msra.mxu0 %v1523
        %2067 = vmatprep.subr.bf16.mxu0 %v1518
        %2068 = vmatpush1.bf16.msra.mxu0 %v1517
        %2069 = vmatprep.subr.bf16.mxu0 %v1512
        %2070 = vmatpush1.bf16.msra.mxu0 %v1511
        %2071 = vmatprep.subr.bf16.mxu0 %v1506
        %2072 = vmatpush1.bf16.msra.mxu0 %v1505
        %2073 = vmatprep.subr.bf16.mxu0 %v1500
        %2074 = vmatpush1.bf16.msra.mxu0 %v1499
        %2075 = vmatprep.subr.bf16.mxu0 %v1494
        %2076 = vmatpush1.bf16.msra.mxu0 %v1493
        %2077 = vmatprep.subr.bf16.mxu0 %v1488
        %2078 = vmatpush1.bf16.msra.mxu0 %v1487
        %2079 = vmatprep.subr.bf16.mxu0 %v1578
        %2080 = vmatpush2.bf16.msra.mxu0 %v1577
        %2081 = vmatprep.subr.bf16.mxu0 %v1572
        %2082 = vmatpush2.bf16.msra.mxu0 %v1571
        %2083 = vmatprep.subr.bf16.mxu0 %v1566
        %2084 = vmatpush2.bf16.msra.mxu0 %v1565
        %2085 = vmatprep.subr.bf16.mxu0 %v1560
        %2086 = vmatpush2.bf16.msra.mxu0 %v1559
        %2087 = vmatprep.subr.bf16.mxu0 %v1554
        %2088 = vmatpush2.bf16.msra.mxu0 %v1553
        %2089 = vmatprep.subr.bf16.mxu0 %v1548
        %2090 = vmatpush2.bf16.msra.mxu0 %v1547
        %2091 = vmatprep.subr.bf16.mxu0 %v1542
        %2092 = vmatpush2.bf16.msra.mxu0 %v1541
        %2093 = vmatprep.subr.bf16.mxu0 %v1536
        %2094 = vmatpush2.bf16.msra.mxu0 %v1535
        %2095 = vmatprep.mubr.bf16.mxu0 %v612
        %2096 = vmatmul.mubr.bf16.gmra.mxu0 %v611
        %v2097 = vpop.f32.mrf.mxu0
        %v2098 = vadd.f32 %v575, %v2097
        %v2099 = vpop.f32.mrf.mxu0
        %v2100 = vadd.f32 %v579, %v2099
        %v2101 = vpop.f32.mrf.mxu0
        %v2102 = vpop.f32.mrf.mxu0
        %2103 = vdwg.mxu0
        %2104 = vmatprep.subr.bf16.mxu0 %v1626
        %2105 = vmatpush1.bf16.msra.mxu0 %v1625
        %2106 = vmatprep.subr.bf16.mxu0 %v1620
        %2107 = vmatpush1.bf16.msra.mxu0 %v1619
        %2108 = vmatprep.subr.bf16.mxu0 %v1614
        %2109 = vmatpush1.bf16.msra.mxu0 %v1613
        %2110 = vmatprep.subr.bf16.mxu0 %v1608
        %2111 = vmatpush1.bf16.msra.mxu0 %v1607
        %2112 = vmatprep.subr.bf16.mxu0 %v1602
        %2113 = vmatpush1.bf16.msra.mxu0 %v1601
        %2114 = vmatprep.subr.bf16.mxu0 %v1596
        %2115 = vmatpush1.bf16.msra.mxu0 %v1595
        %2116 = vmatprep.subr.bf16.mxu0 %v1590
        %2117 = vmatpush1.bf16.msra.mxu0 %v1589
        %2118 = vmatprep.subr.bf16.mxu0 %v1584
        %2119 = vmatpush1.bf16.msra.mxu0 %v1583
        %2120 = vmatprep.subr.bf16.mxu0 %v1674
        %2121 = vmatpush2.bf16.msra.mxu0 %v1673
        %2122 = vmatprep.subr.bf16.mxu0 %v1668
        %2123 = vmatpush2.bf16.msra.mxu0 %v1667
        %2124 = vmatprep.subr.bf16.mxu0 %v1662
        %2125 = vmatpush2.bf16.msra.mxu0 %v1661
        %2126 = vmatprep.subr.bf16.mxu0 %v1656
        %2127 = vmatpush2.bf16.msra.mxu0 %v1655
        %2128 = vmatprep.subr.bf16.mxu0 %v1650
        %2129 = vmatpush2.bf16.msra.mxu0 %v1649
        %2130 = vmatprep.subr.bf16.mxu0 %v1644
        %2131 = vmatpush2.bf16.msra.mxu0 %v1643
        %2132 = vmatprep.subr.bf16.mxu0 %v1638
        %2133 = vmatpush2.bf16.msra.mxu0 %v1637
        %2134 = vmatprep.subr.bf16.mxu0 %v1632
        %2135 = vmatpush2.bf16.msra.mxu0 %v1631
        %2136 = vmatprep.mubr.bf16.mxu0 %v614
        %2137 = vmatmul.mubr.bf16.gmra.mxu0 %v613
        %v2138 = vpop.f32.mrf.mxu0
        %v2139 = vadd.f32 %v2098, %v2138
        %v2140 = vpop.f32.mrf.mxu0
        %v2141 = vadd.f32 %v2100, %v2140
        %v2142 = vpop.f32.mrf.mxu0
        %v2143 = vpop.f32.mrf.mxu0
        %2144 = vdwg.mxu0
        %2145 = vmatprep.subr.bf16.mxu0 %v1722
        %2146 = vmatpush1.bf16.msra.mxu0 %v1721
        %2147 = vmatprep.subr.bf16.mxu0 %v1716
        %2148 = vmatpush1.bf16.msra.mxu0 %v1715
        %2149 = vmatprep.subr.bf16.mxu0 %v1710
        %2150 = vmatpush1.bf16.msra.mxu0 %v1709
        %2151 = vmatprep.subr.bf16.mxu0 %v1704
        %2152 = vmatpush1.bf16.msra.mxu0 %v1703
        %2153 = vmatprep.subr.bf16.mxu0 %v1698
        %2154 = vmatpush1.bf16.msra.mxu0 %v1697
        %2155 = vmatprep.subr.bf16.mxu0 %v1692
        %2156 = vmatpush1.bf16.msra.mxu0 %v1691
        %2157 = vmatprep.subr.bf16.mxu0 %v1686
        %2158 = vmatpush1.bf16.msra.mxu0 %v1685
        %2159 = vmatprep.subr.bf16.mxu0 %v1680
        %2160 = vmatpush1.bf16.msra.mxu0 %v1679
        %2161 = vmatprep.subr.bf16.mxu0 %v1770
        %2162 = vmatpush2.bf16.msra.mxu0 %v1769
        %2163 = vmatprep.subr.bf16.mxu0 %v1764
        %2164 = vmatpush2.bf16.msra.mxu0 %v1763
        %2165 = vmatprep.subr.bf16.mxu0 %v1758
        %2166 = vmatpush2.bf16.msra.mxu0 %v1757
        %2167 = vmatprep.subr.bf16.mxu0 %v1752
        %2168 = vmatpush2.bf16.msra.mxu0 %v1751
        %2169 = vmatprep.subr.bf16.mxu0 %v1746
        %2170 = vmatpush2.bf16.msra.mxu0 %v1745
        %2171 = vmatprep.subr.bf16.mxu0 %v1740
        %2172 = vmatpush2.bf16.msra.mxu0 %v1739
        %2173 = vmatprep.subr.bf16.mxu0 %v1734
        %2174 = vmatpush2.bf16.msra.mxu0 %v1733
        %2175 = vmatprep.subr.bf16.mxu0 %v1728
        %2176 = vmatpush2.bf16.msra.mxu0 %v1727
        %2177 = vmatprep.mubr.bf16.mxu0 %v616
        %2178 = vmatmul.mubr.bf16.gmra.mxu0 %v615
        %v2179 = vpop.f32.mrf.mxu0
        %v2180 = vadd.f32 %v2139, %v2179
        %v2181 = vpop.f32.mrf.mxu0
        %v2182 = vadd.f32 %v2141, %v2181
        %v2183 = vpop.f32.mrf.mxu0
        %v2184 = vpop.f32.mrf.mxu0
        %2185 = vdwg.mxu0
        %2186 = vmatprep.subr.bf16.mxu0 %v1532
        %2187 = vmatpush1.bf16.msra.mxu0 %v1531
        %2188 = vmatprep.subr.bf16.mxu0 %v1526
        %2189 = vmatpush1.bf16.msra.mxu0 %v1525
        %2190 = vmatprep.subr.bf16.mxu0 %v1520
        %2191 = vmatpush1.bf16.msra.mxu0 %v1519
        %2192 = vmatprep.subr.bf16.mxu0 %v1514
        %2193 = vmatpush1.bf16.msra.mxu0 %v1513
        %2194 = vmatprep.subr.bf16.mxu0 %v1508
        %2195 = vmatpush1.bf16.msra.mxu0 %v1507
        %2196 = vmatprep.subr.bf16.mxu0 %v1502
        %2197 = vmatpush1.bf16.msra.mxu0 %v1501
        %2198 = vmatprep.subr.bf16.mxu0 %v1496
        %2199 = vmatpush1.bf16.msra.mxu0 %v1495
        %2200 = vmatprep.subr.bf16.mxu0 %v1490
        %2201 = vmatpush1.bf16.msra.mxu0 %v1489
        %2202 = vmatprep.subr.bf16.mxu0 %v1580
        %2203 = vmatpush2.bf16.msra.mxu0 %v1579
        %2204 = vmatprep.subr.bf16.mxu0 %v1574
        %2205 = vmatpush2.bf16.msra.mxu0 %v1573
        %2206 = vmatprep.subr.bf16.mxu0 %v1568
        %2207 = vmatpush2.bf16.msra.mxu0 %v1567
        %2208 = vmatprep.subr.bf16.mxu0 %v1562
        %2209 = vmatpush2.bf16.msra.mxu0 %v1561
        %2210 = vmatprep.subr.bf16.mxu0 %v1556
        %2211 = vmatpush2.bf16.msra.mxu0 %v1555
        %2212 = vmatprep.subr.bf16.mxu0 %v1550
        %2213 = vmatpush2.bf16.msra.mxu0 %v1549
        %2214 = vmatprep.subr.bf16.mxu0 %v1544
        %2215 = vmatpush2.bf16.msra.mxu0 %v1543
        %2216 = vmatprep.subr.bf16.mxu0 %v1538
        %2217 = vmatpush2.bf16.msra.mxu0 %v1537
        %2218 = vmatprep.mubr.bf16.mxu0 %v612
        %2219 = vmatmul.mubr.bf16.gmra.mxu0 %v611
        %v2220 = vpop.f32.mrf.mxu0
        %v2221 = vadd.f32 %v583, %v2220
        %v2222 = vpop.f32.mrf.mxu0
        %v2223 = vadd.f32 %v587, %v2222
        %v2224 = vpop.f32.mrf.mxu0
        %v2225 = vpop.f32.mrf.mxu0
        %2226 = vdwg.mxu0
        %2227 = vmatprep.subr.bf16.mxu0 %v1628
        %2228 = vmatpush1.bf16.msra.mxu0 %v1627
        %2229 = vmatprep.subr.bf16.mxu0 %v1622
        %2230 = vmatpush1.bf16.msra.mxu0 %v1621
        %2231 = vmatprep.subr.bf16.mxu0 %v1616
        %2232 = vmatpush1.bf16.msra.mxu0 %v1615
        %2233 = vmatprep.subr.bf16.mxu0 %v1610
        %2234 = vmatpush1.bf16.msra.mxu0 %v1609
        %2235 = vmatprep.subr.bf16.mxu0 %v1604
        %2236 = vmatpush1.bf16.msra.mxu0 %v1603
        %2237 = vmatprep.subr.bf16.mxu0 %v1598
        %2238 = vmatpush1.bf16.msra.mxu0 %v1597
        %2239 = vmatprep.subr.bf16.mxu0 %v1592
        %2240 = vmatpush1.bf16.msra.mxu0 %v1591
        %2241 = vmatprep.subr.bf16.mxu0 %v1586
        %2242 = vmatpush1.bf16.msra.mxu0 %v1585
        %2243 = vmatprep.subr.bf16.mxu0 %v1676
        %2244 = vmatpush2.bf16.msra.mxu0 %v1675
        %2245 = vmatprep.subr.bf16.mxu0 %v1670
        %2246 = vmatpush2.bf16.msra.mxu0 %v1669
        %2247 = vmatprep.subr.bf16.mxu0 %v1664
        %2248 = vmatpush2.bf16.msra.mxu0 %v1663
        %2249 = vmatprep.subr.bf16.mxu0 %v1658
        %2250 = vmatpush2.bf16.msra.mxu0 %v1657
        %2251 = vmatprep.subr.bf16.mxu0 %v1652
        %2252 = vmatpush2.bf16.msra.mxu0 %v1651
        %2253 = vmatprep.subr.bf16.mxu0 %v1646
        %2254 = vmatpush2.bf16.msra.mxu0 %v1645
        %2255 = vmatprep.subr.bf16.mxu0 %v1640
        %2256 = vmatpush2.bf16.msra.mxu0 %v1639
        %2257 = vmatprep.subr.bf16.mxu0 %v1634
        %2258 = vmatpush2.bf16.msra.mxu0 %v1633
        %2259 = vmatprep.mubr.bf16.mxu0 %v614
        %2260 = vmatmul.mubr.bf16.gmra.mxu0 %v613
        %v2261 = vpop.f32.mrf.mxu0
        %v2262 = vadd.f32 %v2221, %v2261
        %v2263 = vpop.f32.mrf.mxu0
        %v2264 = vadd.f32 %v2223, %v2263
        %v2265 = vpop.f32.mrf.mxu0
        %v2266 = vpop.f32.mrf.mxu0
        %2267 = vdwg.mxu0
        %2268 = vmatprep.subr.bf16.mxu0 %v1724
        %2269 = vmatpush1.bf16.msra.mxu0 %v1723
        %2270 = vmatprep.subr.bf16.mxu0 %v1718
        %2271 = vmatpush1.bf16.msra.mxu0 %v1717
        %2272 = vmatprep.subr.bf16.mxu0 %v1712
        %2273 = vmatpush1.bf16.msra.mxu0 %v1711
        %2274 = vmatprep.subr.bf16.mxu0 %v1706
        %2275 = vmatpush1.bf16.msra.mxu0 %v1705
        %2276 = vmatprep.subr.bf16.mxu0 %v1700
        %2277 = vmatpush1.bf16.msra.mxu0 %v1699
        %2278 = vmatprep.subr.bf16.mxu0 %v1694
        %2279 = vmatpush1.bf16.msra.mxu0 %v1693
        %2280 = vmatprep.subr.bf16.mxu0 %v1688
        %2281 = vmatpush1.bf16.msra.mxu0 %v1687
        %2282 = vmatprep.subr.bf16.mxu0 %v1682
        %2283 = vmatpush1.bf16.msra.mxu0 %v1681
        %2284 = vmatprep.subr.bf16.mxu0 %v1772
        %2285 = vmatpush2.bf16.msra.mxu0 %v1771
        %2286 = vmatprep.subr.bf16.mxu0 %v1766
        %2287 = vmatpush2.bf16.msra.mxu0 %v1765
        %2288 = vmatprep.subr.bf16.mxu0 %v1760
        %2289 = vmatpush2.bf16.msra.mxu0 %v1759
        %2290 = vmatprep.subr.bf16.mxu0 %v1754
        %2291 = vmatpush2.bf16.msra.mxu0 %v1753
        %2292 = vmatprep.subr.bf16.mxu0 %v1748
        %2293 = vmatpush2.bf16.msra.mxu0 %v1747
        %2294 = vmatprep.subr.bf16.mxu0 %v1742
        %2295 = vmatpush2.bf16.msra.mxu0 %v1741
        %2296 = vmatprep.subr.bf16.mxu0 %v1736
        %2297 = vmatpush2.bf16.msra.mxu0 %v1735
        %2298 = vmatprep.subr.bf16.mxu0 %v1730
        %2299 = vmatpush2.bf16.msra.mxu0 %v1729
        %2300 = vmatprep.mubr.bf16.mxu0 %v616
        %2301 = vmatmul.mubr.bf16.gmra.mxu0 %v615
        %v2302 = vpop.f32.mrf.mxu0
        %v2303 = vadd.f32 %v2262, %v2302
        %v2304 = vpop.f32.mrf.mxu0
        %v2305 = vadd.f32 %v2264, %v2304
        %v2306 = vpop.f32.mrf.mxu0
        %v2307 = vpop.f32.mrf.mxu0
        %2308 = vdwg.mxu0
        %2309 = vmatprep.subr.bf16.mxu0 %v1534
        %2310 = vmatpush1.bf16.msra.mxu0 %v1533
        %2311 = vmatprep.subr.bf16.mxu0 %v1528
        %2312 = vmatpush1.bf16.msra.mxu0 %v1527
        %2313 = vmatprep.subr.bf16.mxu0 %v1522
        %2314 = vmatpush1.bf16.msra.mxu0 %v1521
        %2315 = vmatprep.subr.bf16.mxu0 %v1516
        %2316 = vmatpush1.bf16.msra.mxu0 %v1515
        %2317 = vmatprep.subr.bf16.mxu0 %v1510
        %2318 = vmatpush1.bf16.msra.mxu0 %v1509
        %2319 = vmatprep.subr.bf16.mxu0 %v1504
        %2320 = vmatpush1.bf16.msra.mxu0 %v1503
        %2321 = vmatprep.subr.bf16.mxu0 %v1498
        %2322 = vmatpush1.bf16.msra.mxu0 %v1497
        %2323 = vmatprep.subr.bf16.mxu0 %v1492
        %2324 = vmatpush1.bf16.msra.mxu0 %v1491
        %2325 = vmatprep.subr.bf16.mxu0 %v1582
        %2326 = vmatpush2.bf16.msra.mxu0 %v1581
        %2327 = vmatprep.subr.bf16.mxu0 %v1576
        %2328 = vmatpush2.bf16.msra.mxu0 %v1575
        %2329 = vmatprep.subr.bf16.mxu0 %v1570
        %2330 = vmatpush2.bf16.msra.mxu0 %v1569
        %2331 = vmatprep.subr.bf16.mxu0 %v1564
        %2332 = vmatpush2.bf16.msra.mxu0 %v1563
        %2333 = vmatprep.subr.bf16.mxu0 %v1558
        %2334 = vmatpush2.bf16.msra.mxu0 %v1557
        %2335 = vmatprep.subr.bf16.mxu0 %v1552
        %2336 = vmatpush2.bf16.msra.mxu0 %v1551
        %2337 = vmatprep.subr.bf16.mxu0 %v1546
        %2338 = vmatpush2.bf16.msra.mxu0 %v1545
        %2339 = vmatprep.subr.bf16.mxu0 %v1540
        %2340 = vmatpush2.bf16.msra.mxu0 %v1539
        %2341 = vmatprep.mubr.bf16.mxu0 %v612
        %2342 = vmatmul.mubr.bf16.gmra.mxu0 %v611
        %v2343 = vpop.f32.mrf.mxu0
        %v2344 = vadd.f32 %v591, %v2343
        %v2345 = vpop.f32.mrf.mxu0
        %v2346 = vadd.f32 %v595, %v2345
        %v2347 = vpop.f32.mrf.mxu0
        %v2348 = vpop.f32.mrf.mxu0
        %2349 = vdwg.mxu0
        %2350 = vmatprep.subr.bf16.mxu0 %v1630
        %2351 = vmatpush1.bf16.msra.mxu0 %v1629
        %2352 = vmatprep.subr.bf16.mxu0 %v1624
        %2353 = vmatpush1.bf16.msra.mxu0 %v1623
        %2354 = vmatprep.subr.bf16.mxu0 %v1618
        %2355 = vmatpush1.bf16.msra.mxu0 %v1617
        %2356 = vmatprep.subr.bf16.mxu0 %v1612
        %2357 = vmatpush1.bf16.msra.mxu0 %v1611
        %2358 = vmatprep.subr.bf16.mxu0 %v1606
        %2359 = vmatpush1.bf16.msra.mxu0 %v1605
        %2360 = vmatprep.subr.bf16.mxu0 %v1600
        %2361 = vmatpush1.bf16.msra.mxu0 %v1599
        %2362 = vmatprep.subr.bf16.mxu0 %v1594
        %2363 = vmatpush1.bf16.msra.mxu0 %v1593
        %2364 = vmatprep.subr.bf16.mxu0 %v1588
        %2365 = vmatpush1.bf16.msra.mxu0 %v1587
        %2366 = vmatprep.subr.bf16.mxu0 %v1678
        %2367 = vmatpush2.bf16.msra.mxu0 %v1677
        %2368 = vmatprep.subr.bf16.mxu0 %v1672
        %2369 = vmatpush2.bf16.msra.mxu0 %v1671
        %2370 = vmatprep.subr.bf16.mxu0 %v1666
        %2371 = vmatpush2.bf16.msra.mxu0 %v1665
        %2372 = vmatprep.subr.bf16.mxu0 %v1660
        %2373 = vmatpush2.bf16.msra.mxu0 %v1659
        %2374 = vmatprep.subr.bf16.mxu0 %v1654
        %2375 = vmatpush2.bf16.msra.mxu0 %v1653
        %2376 = vmatprep.subr.bf16.mxu0 %v1648
        %2377 = vmatpush2.bf16.msra.mxu0 %v1647
        %2378 = vmatprep.subr.bf16.mxu0 %v1642
        %2379 = vmatpush2.bf16.msra.mxu0 %v1641
        %2380 = vmatprep.subr.bf16.mxu0 %v1636
        %2381 = vmatpush2.bf16.msra.mxu0 %v1635
        %2382 = vmatprep.mubr.bf16.mxu0 %v614
        %2383 = vmatmul.mubr.bf16.gmra.mxu0 %v613
        %v2384 = vpop.f32.mrf.mxu0
        %v2385 = vadd.f32 %v2344, %v2384
        %v2386 = vpop.f32.mrf.mxu0
        %v2387 = vadd.f32 %v2346, %v2386
        %v2388 = vpop.f32.mrf.mxu0
        %v2389 = vpop.f32.mrf.mxu0
        %2390 = vdwg.mxu0
        %2391 = vmatprep.subr.bf16.mxu0 %v1726
        %2392 = vmatpush1.bf16.msra.mxu0 %v1725
        %2393 = vmatprep.subr.bf16.mxu0 %v1720
        %2394 = vmatpush1.bf16.msra.mxu0 %v1719
        %2395 = vmatprep.subr.bf16.mxu0 %v1714
        %2396 = vmatpush1.bf16.msra.mxu0 %v1713
        %2397 = vmatprep.subr.bf16.mxu0 %v1708
        %2398 = vmatpush1.bf16.msra.mxu0 %v1707
        %2399 = vmatprep.subr.bf16.mxu0 %v1702
        %2400 = vmatpush1.bf16.msra.mxu0 %v1701
        %2401 = vmatprep.subr.bf16.mxu0 %v1696
        %2402 = vmatpush1.bf16.msra.mxu0 %v1695
        %2403 = vmatprep.subr.bf16.mxu0 %v1690
        %2404 = vmatpush1.bf16.msra.mxu0 %v1689
        %2405 = vmatprep.subr.bf16.mxu0 %v1684
        %2406 = vmatpush1.bf16.msra.mxu0 %v1683
        %2407 = vmatprep.subr.bf16.mxu0 %v1774
        %2408 = vmatpush2.bf16.msra.mxu0 %v1773
        %2409 = vmatprep.subr.bf16.mxu0 %v1768
        %2410 = vmatpush2.bf16.msra.mxu0 %v1767
        %2411 = vmatprep.subr.bf16.mxu0 %v1762
        %2412 = vmatpush2.bf16.msra.mxu0 %v1761
        %2413 = vmatprep.subr.bf16.mxu0 %v1756
        %2414 = vmatpush2.bf16.msra.mxu0 %v1755
        %2415 = vmatprep.subr.bf16.mxu0 %v1750
        %2416 = vmatpush2.bf16.msra.mxu0 %v1749
        %2417 = vmatprep.subr.bf16.mxu0 %v1744
        %2418 = vmatpush2.bf16.msra.mxu0 %v1743
        %2419 = vmatprep.subr.bf16.mxu0 %v1738
        %2420 = vmatpush2.bf16.msra.mxu0 %v1737
        %2421 = vmatprep.subr.bf16.mxu0 %v1732
        %2422 = vmatpush2.bf16.msra.mxu0 %v1731
        %2423 = vmatprep.mubr.bf16.mxu0 %v616
        %2424 = vmatmul.mubr.bf16.gmra.mxu0 %v615
        %v2425 = vpop.f32.mrf.mxu0
        %v2426 = vadd.f32 %v2385, %v2425
        %v2427 = vpop.f32.mrf.mxu0
        %v2428 = vadd.f32 %v2387, %v2427
        %v2429 = vpop.f32.mrf.mxu0
        %v2430 = vpop.f32.mrf.mxu0
        %2431 = vdwg.mxu0
        %v2432 = vtanh.pop %v2180
        %v2433 = vtanh.pop %v2182
        %v2434 = vtanh.pop %v2303
        %v2435 = vtanh.pop %v2305
        %v2436 = vtanh.pop %v2426
        %v2437 = vtanh.pop %v2428
        %v2438 = vpack.c.bf16 %v2432, %v2432
        %v2439 = vpack.c.bf16 %v2433, %v2433
        %v2440 = vpack.c.bf16 %v2434, %v2434
        %v2441 = vpack.c.bf16 %v2435, %v2435
        %v2442 = vpack.c.bf16 %v2436, %v2436
        %v2443 = vpack.c.bf16 %v2437, %v2437
        %v2450 = vunpack.c.l.b16 %v2438
        %v2451 = vunpack.c.l.b16 %v2439
        %v2452 = vunpack.c.l.b16 %v2440
        %v2453 = vunpack.c.l.b16 %v2441
        %v2454 = vunpack.c.l.b16 %v2442
        %v2455 = vunpack.c.l.b16 %v2443
        %v2456 = vpack.c.b16 %v2451, %v2450
        %v2457 = vpack.c.b16 %v2453, %v2452
        %v2458 = vpack.c.b16 %v2455, %v2454
        %2462 = vst [vmem:[%s262] sm:$0xff] %v2456
        %2463 = vst [vmem:[%s262 + $0x8] sm:$0xff] %v2457
        %2464 = vst [vmem:[%s262 + $0x10] sm:$0xff] %v2458
        %v2465 = vlaneseq
        %v2466 = vshrl.u32 %v2465, 7
        %s2467 = smul.u32 %s31, 8
        %v2468 = vstv %s2467
        %v2469 = vadd.s32 %v2466, %v2468
        %vm2470 = vcmp.lt.s32.totalorder %v2469, 8
        %v2471 = vsel %vm2470, 1, 0
        %v2472 = vcvt.s32.f32 %v2471
        %v2473 = vld [vmem:[%s269] sm:$0x3f]
        %v2474 = vmul.f32 %v2432, %v2472
        %v2475 = vmul.f32 %v2433, %v2472
        %v2476 = vmul.f32 %v2434, %v2472
        %v2477 = vmul.f32 %v2435, %v2472
        %v2478 = vmul.f32 %v2436, %v2472
        %v2479 = vmul.f32 %v2437, %v2472
        %v2480 = vrot.slane %v2474, 4
        %v2481 = vadd.f32 %v2474, %v2480
        %v2482 = vrot.slane %v2481, 2
        %v2483 = vadd.f32 %v2481, %v2482
        %v2484 = vrot.slane %v2483, 1
        %v2485 = vadd.f32 %v2483, %v2484
        %v2486 = vrot.slane %v2475, 4
        %v2487 = vadd.f32 %v2475, %v2486
        %v2488 = vrot.slane %v2487, 2
        %v2489 = vadd.f32 %v2487, %v2488
        %v2490 = vrot.slane %v2489, 1
        %v2491 = vadd.f32 %v2489, %v2490
        %v2492 = vrot.slane %v2476, 4
        %v2493 = vadd.f32 %v2476, %v2492
        %v2494 = vrot.slane %v2493, 2
        %v2495 = vadd.f32 %v2493, %v2494
        %v2496 = vrot.slane %v2495, 1
        %v2497 = vadd.f32 %v2495, %v2496
        %v2498 = vrot.slane %v2477, 4
        %v2499 = vadd.f32 %v2477, %v2498
        %v2500 = vrot.slane %v2499, 2
        %v2501 = vadd.f32 %v2499, %v2500
        %v2502 = vrot.slane %v2501, 1
        %v2503 = vadd.f32 %v2501, %v2502
        %v2504 = vrot.slane %v2478, 4
        %v2505 = vadd.f32 %v2478, %v2504
        %v2506 = vrot.slane %v2505, 2
        %v2507 = vadd.f32 %v2505, %v2506
        %v2508 = vrot.slane %v2507, 1
        %v2509 = vadd.f32 %v2507, %v2508
        %v2510 = vrot.slane %v2479, 4
        %v2511 = vadd.f32 %v2479, %v2510
        %v2512 = vrot.slane %v2511, 2
        %v2513 = vadd.f32 %v2511, %v2512
        %v2514 = vrot.slane %v2513, 1
        %v2515 = vadd.f32 %v2513, %v2514
        %v2522 = vcombine.low %v2485, %v2491
        %v2523 = vcombine.low %v2497, %v2503
        %v2524 = vcombine.low %v2509, %v2515
        %v2526 = vunpack.c.l.s4 1966171168
        %v2527 = vunpack.c.0.s8 %v2526
        %v2528 = vlaneseq
        %v2529 = vshrl.u32 %v2528, 7
        %v2530 = vsub.s32 %v2527, %v2529
        %v2531 = vrot.slane %v2522, %v2530
        %v2533 = vunpack.c.l.s4 1966171168
        %v2534 = vunpack.c.0.s8 %v2533
        %v2535 = vlaneseq
        %v2536 = vshrl.u32 %v2535, 7
        %v2537 = vsub.s32 %v2534, %v2536
        %v2538 = vrot.slane %v2523, %v2537
        %v2540 = vunpack.c.l.s4 1966171168
        %v2541 = vunpack.c.0.s8 %v2540
        %v2542 = vlaneseq
        %v2543 = vshrl.u32 %v2542, 7
        %v2544 = vsub.s32 %v2541, %v2543
        %v2545 = vrot.slane %v2524, %v2544
        %v2546 = vcombine.low %v2531, %v2538
        %v2548 = vunpack.c.l.s4 1966171168
        %v2549 = vunpack.c.0.s8 %v2548
        %v2550 = vlaneseq
        %v2551 = vshrl.u32 %v2550, 7
        %v2552 = vsub.s32 %v2549, %v2551
        %v2553 = vrot.slane %v2546, %v2552
        %v2555 = vunpack.c.l.s4 1966171168
        %v2556 = vunpack.c.0.s8 %v2555
        %v2557 = vlaneseq
        %v2558 = vshrl.u32 %v2557, 7
        %v2559 = vsub.s32 %v2556, %v2558
        %v2560 = vrot.slane %v2545, %v2559
        %v2561 = vcombine.low %v2553, %v2560
        %v2563 = vadd.f32 %v2473, %v2561
        %v2564 = vlaneseq
        %vm2565 = vcmp.ge.s32.totalorder %v2564, 0
        %vm2566 = vcmp.lt.s32.totalorder %v2564, 768
        %vm2567 = vmand %vm2565, %vm2566
        %2568 = vst.msk [vmem:[%s269] sm:$0x3f] %vm2567, %v2563
        %s2569 = sand.u32 %s118, 1
        %s2570 = scalar_lea.sflag [#allocation4], %s2569
        %s2571 = sand.u32 %s118, 1
        %s2572 = smul.addr %s2571, 24
        %s2573 = scalar_lea.vmem [#allocation8], %s2572
        %s2574 = sand.u32 %s144, 1
        %s2575 = scalar_lea.sflag [#allocation10], %s2574
        %s2576 = sand.u32 %s144, 1
        %s2577 = smul.addr %s2576, 6
        %s2578 = scalar_lea.vmem [#allocation9], %s2577
        // Predicated region
        $region49: #{tpu_custom_call.1} parent=31 // pred_check
          %p2579 = pneg %p128
        $region50: #{tpu_custom_call.1} parent=31 // pred_check_branch
          %2581 = sbr.rel (%p2579) target = $region52
        $region51: #{tpu_custom_call.1} parent=31 // pred_region
          %s2583 = ssub.s32 384, 384
          %2584 = vsyncadd %s2570, %s2583
          %s2585 = smul.addr %s31, 6
          %s2586 = smul.addr %s30, 6
          %s2587 = sadd.s32 %s2585, %s2586
          %s2588 = smul.addr %s2587, 64
          %s2589 = scalar_lea.hbm %s3, %s2588
          %s2591 = sshll.u32 %s2573, 4
          %s2592 = int_to_ptr.vmem [resolvable:$true] %s2591
          %2594 = dma.vmem_to_hbm [thread:$0]  %s2592, 384, %s2589, %s2570
        $region52: #{tpu_custom_call.1} parent=31 // pred_fallthru
          _
        // Predicated region
        $region53: #{tpu_custom_call.1} parent=31 // pred_check
          %p2595 = pneg %p154
        $region54: #{tpu_custom_call.1} parent=31 // pred_check_branch
          %2597 = sbr.rel (%p2595) target = $region56
        $region55: #{tpu_custom_call.1} parent=31 // pred_region
          %s2599 = ssub.s32 96, 96
          %2600 = vsyncadd %s2575, %s2599
          %s2601 = smul.addr %s30, 6
          %s2602 = smul.addr %s2601, 16
          %s2603 = scalar_lea.hbm %s4, %s2602
          %s2605 = sshll.u32 %s2578, 4
          %s2606 = int_to_ptr.vmem [resolvable:$true] %s2605
          %2608 = dma.vmem_to_hbm [thread:$0]  %s2606, 96, %s2603, %s2575
        $region56: #{tpu_custom_call.1} parent=31 // pred_fallthru
          _
      $region32: #{tpu_custom_call.1} parent=5 // pred_fallthru
        _
      %p2609 = scmp.le.s32.totalorder 2, %s21
      // Predicated region
      $region57: #{tpu_custom_call.1} parent=5 // pred_check
        %p2610 = pneg %p2609
      $region58: #{tpu_custom_call.1} parent=5 // pred_check_branch
        %2612 = sbr.rel (%p2610) target = $region60
      $region59: #{tpu_custom_call.1} parent=5 // pred_region
        %s2613 = ssub.s32 %s21, 2
        // Predicated region
        $region61: #{tpu_custom_call.1} parent=59 // pred_check
          %p2614 = pneg %p134
        $region62: #{tpu_custom_call.1} parent=59 // pred_check_branch
          %2616 = sbr.rel (%p2614) target = $region64
        $region63: #{tpu_custom_call.1} parent=59 // pred_region
          %s2617 = sand.u32 %s119, 1
          %s2618 = scalar_lea.sflag [#allocation4], %s2617
          %s2619 = sand.u32 %s119, 1
          %s2620 = smul.addr %s2619, 24
          %s2621 = scalar_lea.vmem [#allocation8], %s2620
          %2622 = dma.done %s2618, 384
        $region64: #{tpu_custom_call.1} parent=59 // pred_fallthru
          _
        // Predicated region
        $region65: #{tpu_custom_call.1} parent=59 // pred_check
          %p2623 = pneg %p160
        $region66: #{tpu_custom_call.1} parent=59 // pred_check_branch
          %2625 = sbr.rel (%p2623) target = $region68
        $region67: #{tpu_custom_call.1} parent=59 // pred_region
          %s2626 = sand.u32 %s145, 1
          %s2627 = scalar_lea.sflag [#allocation10], %s2626
          %s2628 = sand.u32 %s145, 1
          %s2629 = smul.addr %s2628, 6
          %s2630 = scalar_lea.vmem [#allocation9], %s2629
          %2631 = dma.done %s2627, 96
        $region68: #{tpu_custom_call.1} parent=59 // pred_fallthru
          _
      $region60: #{tpu_custom_call.1} parent=5 // pred_fallthru
        _
    $region6: #{tpu_custom_call.1} parent=1 // loop_footer
      %s25 = sadd.s32 1, %s21
    $region7: #{tpu_custom_call.1} parent=1 // loop_footer_branch
      %20 = sbr.rel target = $region3
    $region8: #{tpu_custom_call.1} parent=1 // loop_exit
      _
    %2632 = vsyncpa [#allocation3], 1
    %s2633 = scalar_lea.sflag [#allocation3], 1
    %2634 = vsyncpa %s2633, 1
    %2635 = vsyncpa [#allocation6], 1
    %2636 = vsyncpa [#allocation4], 1
    %s2637 = scalar_lea.sflag [#allocation4], 1
    %2638 = vsyncpa %s2637, 1
    %2639 = vsyncpa [#allocation10], 1
    %s2640 = scalar_lea.sflag [#allocation10], 1
    %2641 = vsyncpa %s2640, 1

</llo_original>
